<compile_context>
chip_gen: v6e
topology: v6e:2x2x1
jax: 0.10.0
libtpu: 0.0.40
codegen_flags: <defaults>
</compile_context>

<pallas_src>
import functools

import jax
import jax.numpy as jnp
from jax.experimental import pallas as pl
from jax.experimental.pallas import tpu as pltpu


_PARALLEL_1D = pltpu.CompilerParams(dimension_semantics=("parallel",))


def _round_up(x, m):
    return ((x + m - 1) // m) * m


def _choose_tile(total, *, lane=128, max_cols=8192, min_steps=2):
    """Largest lane-multiple tile that divides the lane-rounded total, capped at max_cols,
    preferring >= min_steps grid steps (so v7x's two TensorCores both get work)."""
    total_pad = _round_up(max(int(total), lane), lane)
    units = total_pad // lane
    max_units = max(1, max_cols // lane)
    divs = [d for d in range(1, units + 1) if units % d == 0 and d <= max_units]
    pref = [d for d in divs if units // d >= min_steps]
    d = max(pref) if pref else max(divs)
    return d * lane, total_pad


# --------------------------------------------------------------------------------------
# Pallas kernels
# --------------------------------------------------------------------------------------
def _cls_loss_kernel(pred_ref, code_ref, out_ref, *, alpha, gamma, fn_weight, fn_threshold,
                     use_hfp, hard_fp_thrs1, hard_fp_thrs2, hard_fp_w1, hard_fp_w2):
    """Focal-weighted BCE-with-logits + FN / hard-FP re-weighting.

    Blocks: (b, TILE_N) f32.  code = target + 2*ignore  (0=neg, 1=pos, 2/3=ignored)."""
    pred = pred_ref[...].astype(jnp.float32)
    code = code_ref[...]

    is_pos = (code == 1.0) | (code == 3.0)
    is_ign = code >= 2.0
    tgt = jnp.where(is_pos, 1.0, 0.0)

    # Shared exponent e = exp(-|x|): exact, numerically-stable sigmoid and BCE reuse it.
    e = jnp.exp(-jnp.abs(pred))
    r = 1.0 / (1.0 + e)
    prob = jnp.where(pred >= 0.0, r, e * r)
    prob = jnp.clip(prob, 1e-4, 1.0 - 1e-4)

    alpha_factor = jnp.where(is_pos, alpha, 1.0 - alpha)
    focal = jnp.where(is_pos, 1.0 - prob, prob)
    if gamma == 2.0:
        focal_pow = focal * focal
    else:
        focal_pow = jnp.exp(gamma * jnp.log(focal))
    focal_w = alpha_factor * focal_pow

    # binary_cross_entropy_with_logits (stable), reusing e = exp(-|x|)
    bce = jnp.maximum(pred, 0.0) - pred * tgt + jnp.log(1.0 + e)

    loss = focal_w * bce
    loss = jnp.where(is_ign, 0.0, loss)

    # False-negative up-weighting (only fires where target == 1, so it is a no-op for a
    # batch row with no positives — identical to the reference branch structure).
    fn_idx = (prob < fn_threshold) & is_pos
    loss = jnp.where(fn_idx, loss * fn_weight, loss)

    if use_hfp:
        hfp_w = hard_fp_w1 + jnp.clip((prob - hard_fp_thrs1) / (hard_fp_thrs2 - hard_fp_thrs1),
                                      0.0, 1.0) * (hard_fp_w2 - hard_fp_w1)
        hfp_idx = (prob > hard_fp_thrs1) & jnp.logical_not(is_pos)
        loss = jnp.where(hfp_idx, loss * hfp_w, loss)

    out_ref[...] = loss


def _dfl_kernel(pred_ref, tgt_ref, out_ref, *, bins, min_reg, max_reg):
    """Distribution focal loss.  pred block: (bins, TM); tgt/out block: (1, TM)."""
    pred = pred_ref[...]
    tgt = tgt_ref[...]

    step = (max_reg - min_reg) / (bins - 1)
    inv_step = 1.0 / step

    # torch.searchsorted(base, t) (left) == #{base < t} == clamp(ceil((t-min)/step), 0, bins)
    # TODO(synk): can differ from torch by +-1 when a target lands exactly on a bin edge
    # (fp rounding); out-of-range indices wrap instead of raising.
    u = (tgt - min_reg) * inv_step
    disr = jnp.clip(jnp.ceil(u), 0.0, float(bins)).astype(jnp.int32)
    disl = disr - 1
    disl_w = jnp.where(disl < 0, disl + bins, disl)
    disr_w = jnp.where(disr >= bins, disr - bins, disr)

    base_l = min_reg + step * disl_w.astype(jnp.float32)
    base_r = min_reg + step * disr_w.astype(jnp.float32)
    wl = base_r - tgt
    wr = tgt - base_l

    # Single weighted one-hot (folds the two gathers of the reference formulation):
    #   loss = lse*(wl+wr) - sum(pred * (oh_l*wl + oh_r*wr), axis=bins)
    iota = jax.lax.broadcasted_iota(jnp.int32, (bins, 1), 0)
    oh = jnp.where(iota == disl_w, wl, 0.0) + jnp.where(iota == disr_w, wr, 0.0)

    m = jnp.max(pred, axis=0, keepdims=True)
    lse = m + jnp.log(jnp.sum(jnp.exp(pred - m), axis=0, keepdims=True))
    out_ref[...] = lse * (wl + wr) - jnp.sum(pred * oh, axis=0, keepdims=True)


def _dist_kernel(ctr_ref, sp_ref, anc_ref, out_ref):
    """distance = -sum_k ((ctr_k - anchor_k) * sp_k)^2; ctr/sp: (BA,3), anc: (3,TP)."""
    acc = jnp.zeros(out_ref.shape, jnp.float32)
    for k in range(3):
        c = ctr_ref[:, k:k + 1]          # (BA, 1)
        s = sp_ref[:, k:k + 1]           # (BA, 1)
        a = anc_ref[k:k + 1, :]          # (1, TP)
        d = (c - a) * s                  # (BA, TP)
        acc = acc + d * d
    out_ref[...] = -acc


def _diou_kernel(p_ref, t_ref, o_ref):
    """DIoU between zyxdhw boxes; p/t: (6, R, 128), out: (R, 128)."""
    eps = 1e-7
    p_z, p_y, p_x, p_d, p_h, p_w = [p_ref[k] for k in range(6)]
    t_z, t_y, t_x, t_d, t_h, t_w = [t_ref[k] for k in range(6)]

    b1_z1 = p_z - p_d * 0.5; b1_z2 = p_z + p_d * 0.5
    b1_y1 = p_y - p_h * 0.5; b1_y2 = p_y + p_h * 0.5
    b1_x1 = p_x - p_w * 0.5; b1_x2 = p_x + p_w * 0.5
    b2_z1 = t_z - t_d * 0.5; b2_z2 = t_z + t_d * 0.5
    b2_y1 = t_y - t_h * 0.5; b2_y2 = t_y + t_h * 0.5
    b2_x1 = t_x - t_w * 0.5; b2_x2 = t_x + t_w * 0.5

    w1, h1, d1 = b1_x2 - b1_x1, b1_y2 - b1_y1, b1_z2 - b1_z1
    w2, h2, d2 = b2_x2 - b2_x1, b2_y2 - b2_y1, b2_z2 - b2_z1

    inter = (jnp.maximum(jnp.minimum(b1_x2, b2_x2) - jnp.maximum(b1_x1, b2_x1), 0.0) *
             jnp.maximum(jnp.minimum(b1_y2, b2_y2) - jnp.maximum(b1_y1, b2_y1), 0.0) *
             jnp.maximum(jnp.minimum(b1_z2, b2_z2) - jnp.maximum(b1_z1, b2_z1), 0.0)) + eps
    union = w1 * h1 * d1 + w2 * h2 * d2 - inter
    iou = inter / union

    cw = jnp.maximum(b1_x2, b2_x2) - jnp.minimum(b1_x1, b2_x1)
    ch = jnp.maximum(b1_y2, b2_y2) - jnp.minimum(b1_y1, b2_y1)
    cd = jnp.maximum(b1_z2, b2_z2) - jnp.minimum(b1_z1, b2_z1)
    c2 = cw * cw + ch * ch + cd * cd + eps
    rho2 = ((b2_x1 + b2_x2 - b1_x1 - b1_x2) ** 2 +
            (b2_y1 + b2_y2 - b1_y1 - b1_y2) ** 2 +
            (b2_z1 + b2_z2 - b1_z1 - b1_z2) ** 2) / 4.0
    o_ref[...] = iou - rho2 / c2


def diou_fg(pred_bboxes, target_bboxes):
    """DIoU on a small (b, K, 6) foreground-candidate set; returns (b, K)."""
    b, K, _ = pred_bboxes.shape
    M = b * K
    R = max(1, _round_up(M, 128) // 128)
    M_pad = R * 128

    def prep(x):
        x = jnp.transpose(x.reshape(M, 6)).astype(jnp.float32)          # (6, M)
        x = jnp.pad(x, ((0, 0), (0, M_pad - M)))
        return x.reshape(6, R, 128)

    out = pl.pallas_call(
        _diou_kernel,
        out_shape=jax.ShapeDtypeStruct((R, 128), jnp.float32),
    )(prep(pred_bboxes), prep(target_bboxes))
    return out.reshape(-1)[:M].reshape(b, K)


# --------------------------------------------------------------------------------------
# Plain-JAX glue (anchors, target preprocessing, positive-target assignment)
# --------------------------------------------------------------------------------------
def make_anchors(feat_shape, input_size, grid_cell_offset=0.0):
    # TODO(synk): make_anchors is an external helper in the reference repo; standard
    # z-major grid anchors with per-axis stride = input_size / feature_size assumed.
    _, _, d, h, w = feat_shape
    strides = jnp.array([input_size[0] / d, input_size[1] / h, input_size[2] / w],
                        jnp.float32)
    sz = jnp.arange(d, dtype=jnp.float32) + grid_cell_offset
    sy = jnp.arange(h, dtype=jnp.float32) + grid_cell_offset
    sx = jnp.arange(w, dtype=jnp.float32) + grid_cell_offset
    az, ay, ax = jnp.meshgrid(sz, sy, sx, indexing="ij")
    anchor_points = jnp.stack([az, ay, ax], axis=-1).reshape(-1, 3)
    stride_tensor = jnp.broadcast_to(strides, (d * h * w, 3))
    return anchor_points, stride_tensor


def target_preprocess(annotations, crop_size, feat_dhw):
    """JAX (jit-able) version of DetectionLoss.target_proprocess.

    Failing / invalid GTs are kept in place as all -1 rows instead of being compacted to
    the front; downstream consumers are invariant to this (only valid rows are used)."""
    ann = annotations.astype(jnp.float32)
    b, A, _ = ann.shape
    Dc, Hc, Wc = float(crop_size[0]), float(crop_size[1]), float(crop_size[2])
    Df, Hf, Wf = int(feat_dhw[0]), int(feat_dhw[1]), int(feat_dhw[2])

    valid_in = ann[:, :, -1] > -1
    cz, cy, cx = ann[..., 0], ann[..., 1], ann[..., 2]
    dd, dh, dw = ann[..., 3], ann[..., 4], ann[..., 5]

    z1 = jnp.maximum(cz - dd * 0.5, 0.0); z2 = jnp.minimum(cz + dd * 0.5, Dc)
    y1 = jnp.maximum(cy - dh * 0.5, 0.0); y2 = jnp.minimum(cy + dh * 0.5, Hc)
    x1 = jnp.maximum(cx - dw * 0.5, 0.0); x2 = jnp.minimum(cx + dw * 0.5, Wc)
    nd = jnp.maximum(z2 - z1, 0.0); nh = jnp.maximum(y2 - y1, 0.0); nw = jnp.maximum(x2 - x1, 0.0)
    vol = nd * nh * nw
    orig_vol = dd * dh * dw
    percent = vol / jnp.where(orig_vol == 0.0, 1.0, orig_vol)
    keep = valid_in & (vol > 0.0) & (percent > 0.1) & (vol >= 15.0)
    to_ignore = valid_in & (vol > 0.0) & jnp.logical_not((percent > 0.1) & (vol >= 15.0))

    new_rows = jnp.stack([z1 + 0.5 * nd, y1 + 0.5 * nh, x1 + 0.5 * nw, nd, nh, nw,
                          ann[..., 6], ann[..., 7], ann[..., 8], jnp.zeros_like(nd)], axis=-1)
    ann_new = jnp.where(keep[..., None], new_rows, -jnp.ones_like(new_rows))

    # -1 ignore-volume mask on the classification grid (same semantics as the reference
    # integer slicing: [floor(lo) : ceil(hi)] clamped to the grid).
    iz = jnp.arange(Df, dtype=jnp.float32)
    iy = jnp.arange(Hf, dtype=jnp.float32)
    ix = jnp.arange(Wf, dtype=jnp.float32)
    z1f, z2c = jnp.floor(z1), jnp.ceil(z2)
    y1f, y2c = jnp.floor(y1), jnp.ceil(y2)
    x1f, x2c = jnp.floor(x1), jnp.ceil(x2)

    mask_ig = jnp.zeros((b, Df, Hf, Wf), bool)
    for a in range(A):        # A is the (small, static) annotation count
        zb = (iz[None, :] >= z1f[:, a][:, None]) & (iz[None, :] < z2c[:, a][:, None])   # (b, Df)
        yb = (iy[None, :] >= y1f[:, a][:, None]) & (iy[None, :] < y2c[:, a][:, None])
        xb = (ix[None, :] >= x1f[:, a][:, None]) & (ix[None, :] < x2c[:, a][:, None])
        box = zb[:, :, None, None] & yb[:, None, :, None] & xb[:, None, None, :]
        mask_ig = mask_ig | (box & to_ignore[:, a][:, None, None, None])
    target_mask_ignore = jnp.where(mask_ig, -1.0, 0.0)
    return ann_new, target_mask_ignore


def get_pos_target(annotations, anchor_points, stride, pos_target_topk, ignore_ratio):
    b, A, _ = annotations.shape
    P = anchor_points.shape[0]
    mask_gt = annotations[:, :, -1] > -1                                 # (b, A) bool
    ctr_gt = annotations[:, :, :3] / stride                              # (b, A, 3)
    shape = annotations[:, :, 3:6] / 2.0
    sp = annotations[:, :, 6:9]

    # --- anchor <-> GT distance, Pallas (lane-dense over anchors) --------------------
    BA = b * A
    tp, P_pad = _choose_tile(P, max_cols=4096)
    anc_t = jnp.pad(jnp.transpose(anchor_points).astype(jnp.float32),
                    ((0, 0), (0, P_pad - P)))                            # (3, P_pad)

    dist = pl.pallas_call(
        _dist_kernel,
        grid=(P_pad // tp,),
        in_specs=[pl.BlockSpec((BA, 3), lambda i: (0, 0)),
                  pl.BlockSpec((BA, 3), lambda i: (0, 0)),
                  pl.BlockSpec((3, tp), lambda i: (0, i))],
        out_specs=pl.BlockSpec((BA, tp), lambda i: (0, i)),
        out_shape=jax.ShapeDtypeStruct((BA, P_pad), jnp.float32),
        compiler_params=_PARALLEL_1D,
    )(ctr_gt.reshape(BA, 3).astype(jnp.float32),
      sp.reshape(BA, 3).astype(jnp.float32),
      anc_t)
    dist = dist[:, :P].reshape(b, A, P)

    # --- top-k assignment, scattered straight into (b, P) buffers --------------------
    k_all = min((ignore_ratio + 1) * pos_target_topk, P)
    kp = min(pos_target_topk, k_all)
    _, topk_inds = jax.lax.top_k(dist, k_all)                            # (b, A, k_all)
    pos_inds = topk_inds[:, :, :kp]
    ign_inds = topk_inds[:, :, kp:]

    bi = jnp.arange(b)[:, None, None]
    valid = mask_gt[:, :, None]                                          # (b, A, 1)

    score_vals = jnp.broadcast_to(valid.astype(jnp.float32), pos_inds.shape)
    target_scores = jnp.zeros((b, P), jnp.float32).at[bi, pos_inds].max(score_vals)

    a_vals = jnp.broadcast_to(jnp.arange(A, dtype=jnp.int32)[None, :, None], pos_inds.shape)
    a_vals = jnp.where(valid, a_vals, A)                                 # invalid GT -> sentinel
    gt_idx = jnp.full((b, P), A, jnp.int32).at[bi, pos_inds].min(a_vals)
    gt_idx = jnp.where(gt_idx == A, 0, gt_idx)                           # == argmax of mask_pos

    ign_vals = jnp.broadcast_to(jnp.where(valid, -1.0, 0.0), ign_inds.shape)
    mask_ign = jnp.zeros((b, P), jnp.float32).at[bi, ign_inds].min(ign_vals)

    gt_idx_flat = gt_idx + jnp.arange(b, dtype=jnp.int32)[:, None] * A
    target_ctr = ctr_gt.reshape(-1, 3)[gt_idx_flat]                      # (b, P, 3)
    target_offset = target_ctr - anchor_points
    target_shape = shape.reshape(-1, 3)[gt_idx_flat]
    target_bboxes = annotations[:, :, :6].reshape(-1, 6)[gt_idx_flat]
    return (target_offset, target_shape, target_bboxes,
            target_scores[..., None], mask_ign[..., None])


# --------------------------------------------------------------------------------------
# DetectionLoss (Pallas-backed, jit-compiled end to end)
# --------------------------------------------------------------------------------------
class DetectionLossPallas:
    def __init__(self, crop_size=(96, 96, 96), pos_target_topk=7, pos_ignore_ratio=3,
                 cls_num_neg=10000, cls_num_hard=100, cls_fn_weight=4.0, cls_fn_threshold=0.8,
                 cls_neg_pos_ratio=100, cls_hard_fp_thrs1=0.5, cls_hard_fp_thrs2=0.7,
                 cls_hard_fp_w1=1.5, cls_hard_fp_w2=2.0, cls_focal_alpha=0.75,
                 cls_focal_gamma=2.0):
        self.crop_size = list(crop_size)
        self.pos_target_topk = pos_target_topk
        self.pos_ignore_ratio = pos_ignore_ratio
        self.cls_num_neg = cls_num_neg
        self.cls_num_hard = cls_num_hard
        self.cls_fn_weight = cls_fn_weight
        self.cls_fn_threshold = cls_fn_threshold
        self.cls_neg_pos_ratio = cls_neg_pos_ratio
        self.cls_hard_fp_thrs1 = cls_hard_fp_thrs1
        self.cls_hard_fp_thrs2 = cls_hard_fp_thrs2
        self.cls_hard_fp_w1 = cls_hard_fp_w1
        self.cls_hard_fp_w2 = cls_hard_fp_w2
        self.cls_focal_alpha = cls_focal_alpha
        self.cls_focal_gamma = cls_focal_gamma
        self._forward_jit = jax.jit(self._forward)

    # -- classification loss ----------------------------------------------------------
    def _cls_loss(self, pred2, tgt2, ign2, max_annots):
        b, N = pred2.shape
        tile, N_pad = _choose_tile(N, max_cols=16384)
        code = tgt2 + 2.0 * ign2                      # 0=neg, 1=pos, 2/3=ignored (exact f32)
        if N_pad != N:
            pred_in = jnp.pad(pred2, ((0, 0), (0, N_pad - N)))
            code_in = jnp.pad(code, ((0, 0), (0, N_pad - N)), constant_values=2.0)
        else:
            pred_in, code_in = pred2, code

        use_hfp = not (self.cls_hard_fp_thrs1 == -1 or self.cls_hard_fp_w1 == -1 or
                       self.cls_hard_fp_thrs2 == -1 or self.cls_hard_fp_w2 == -1)
        kern = functools.partial(
            _cls_loss_kernel, alpha=self.cls_focal_alpha, gamma=self.cls_focal_gamma,
            fn_weight=self.cls_fn_weight, fn_threshold=self.cls_fn_threshold,
            use_hfp=use_hfp, hard_fp_thrs1=self.cls_hard_fp_thrs1,
            hard_fp_thrs2=self.cls_hard_fp_thrs2, hard_fp_w1=self.cls_hard_fp_w1,
            hard_fp_w2=self.cls_hard_fp_w2)
        loss = pl.pallas_call(
            kern,
            grid=(N_pad // tile,),
            in_specs=[pl.BlockSpec((b, tile), lambda i: (0, i)),
                      pl.BlockSpec((b, tile), lambda i: (0, i))],
            out_specs=pl.BlockSpec((b, tile), lambda i: (0, i)),
            out_shape=jax.ShapeDtypeStruct((b, N_pad), jnp.float32),
            compiler_params=_PARALLEL_1D,
        )(pred_in, code_in)
        loss = loss[:, :N]

        num_pos = jnp.sum((tgt2 == 1.0), axis=1)                         # (b,) int
        has_pos = num_pos > 0
        pos_sum = jnp.sum(jnp.where(tgt2 == 1.0, loss, 0.0), axis=1)

        neg_masked = jnp.where(tgt2 == 0.0, loss, 0.0)
        # Static bound on selectable negatives: each GT yields at most pos_target_topk
        # positives, so neg_pos_ratio * topk * max_annots; never < cls_num_hard; capped by
        # cls_num_neg (reference subsampling) and N.  top_k with this k is exact (loss>=0).
        k_max = int(min(N, self.cls_num_neg,
                        max(self.cls_num_hard,
                            self.cls_neg_pos_ratio * self.pos_target_topk * max_annots)))
        # TODO(synk): the reference randomly subsamples <= cls_num_neg negatives before the
        # top-k; that is only an identity on the selected multiset when N <= cls_num_neg.
        neg_top, _ = jax.lax.top_k(neg_masked, k_max)                    # (b, k_max) desc
        num_neg_avail = jnp.sum((tgt2 == 0.0), axis=1)
        k_pos = jnp.minimum(self.cls_neg_pos_ratio * num_pos, num_neg_avail)
        idx = jnp.arange(k_max)[None, :]
        neg_sum_haspos = jnp.sum(jnp.where(idx < k_pos[:, None], neg_top, 0.0), axis=1)
        neg_sum_nopos = jnp.sum(jnp.where(idx < min(self.cls_num_hard, k_max), neg_top, 0.0),
                                axis=1)

        denom = jnp.maximum(num_pos.astype(jnp.float32), 1.0)
        pos_term = jnp.where(has_pos, pos_sum / denom, 0.0)
        neg_term = jnp.where(has_pos, neg_sum_haspos / denom, neg_sum_nopos)
        return jnp.sum(pos_term) / b, jnp.sum(neg_term) / b

    # -- fused shape/offset distribution focal loss ------------------------------------
    def _dfl_losses(self, Shape_feat, Offset_feat, target_shape, target_offset,
                    mask_ignore, target_scores, fg_inds, min_reg=0, max_reg=35):
        bins = Shape_feat.shape[-1]
        b, N = target_scores.shape[:2]
        K = fg_inds.shape[1]

        mask = target_scores.astype(jnp.float32)                          # (b, N, 1)
        # Faithful to the reference: `mask[mask_ignore.long()] = 0` does advanced indexing
        # on the *batch* axis: it zeroes batch row 0 (if any 0 is present in mask_ignore)
        # and batch row 1 (if any 1 is present).
        has0 = jnp.any(mask_ignore == 0)
        mask = mask.at[0].set(jnp.where(has0, jnp.zeros_like(mask[0]), mask[0]))
        if b > 1:
            has1 = jnp.any(mask_ignore == 1)
            mask = mask.at[1].set(jnp.where(has1, jnp.zeros_like(mask[1]), mask[1]))
        mask_b = (mask[..., 0] != 0.0)                                     # (b, N)

        # Only foreground-candidate rows contribute (every masked row is positive, and the
        # candidate set contains every positive anchor), so gather them and skip >99% of
        # the DFL input traffic.
        bi = jnp.arange(b)[:, None]
        w_fg = jnp.take_along_axis(mask_b.astype(jnp.float32), fg_inds, axis=1)  # (b, K)
        sf = Shape_feat[bi, fg_inds]                                       # (b, K, 3, bins)
        of = Offset_feat[bi, fg_inds]
        ts = target_shape[bi, fg_inds]                                     # (b, K, 3)
        to = target_offset[bi, fg_inds]

        M1 = b * K * 3
        M = 2 * M1
        tm, M_pad = _choose_tile(M, max_cols=8192)

        # Single transpose + pad for both branches; bins on sublanes, rows dense on lanes.
        pred_all = jnp.concatenate([sf.reshape(M1, bins), of.reshape(M1, bins)], axis=0)
        pred_t = jnp.pad(jnp.transpose(pred_all).astype(jnp.float32),
                         ((0, 0), (0, M_pad - M)))                         # (bins, M_pad)
        tgt_all = jnp.concatenate([ts.reshape(1, M1), to.reshape(1, M1)],
                                  axis=1).astype(jnp.float32)
        tgt_all = jnp.pad(tgt_all, ((0, 0), (0, M_pad - M)))

        kern = functools.partial(_dfl_kernel, bins=bins,
                                 min_reg=float(min_reg), max_reg=float(max_reg))
        loss = pl.pallas_call(
            kern,
            grid=(M_pad // tm,),
            in_specs=[pl.BlockSpec((bins, tm), lambda i: (0, i)),
                      pl.BlockSpec((1, tm), lambda i: (0, i))],
            out_specs=pl.BlockSpec((1, tm), lambda i: (0, i)),
            out_shape=jax.ShapeDtypeStruct((1, M_pad), jnp.float32),
            compiler_params=_PARALLEL_1D,
        )(pred_t, tgt_all)
        loss = loss[0]

        w = jnp.broadcast_to(w_fg[..., None], (b, K, 3)).reshape(M1)
        cnt = jnp.sum(w)
        denom = jnp.maximum(cnt, 1.0)
        shape_loss = jnp.where(cnt > 0, jnp.sum(loss[:M1] * w) / denom, 0.0)
        offset_loss = jnp.where(cnt > 0, jnp.sum(loss[M1:M] * w) / denom, 0.0)
        return shape_loss, offset_loss

    # -- foreground-only DIoU loss ------------------------------------------------------
    def _iou_loss(self, Shape, Offset, anchor_points, stride_tensor,
                  target_bboxes, fg_inds, fg_valid):
        b = Shape.shape[0]
        P = anchor_points.shape[0]
        K = fg_inds.shape[1]
        bi = jnp.arange(b)[:, None]

        idx3 = jnp.broadcast_to(fg_inds[:, None, :], (b, 3, K))
        off_fg = jnp.transpose(jnp.take_along_axis(
            Offset.reshape(b, 3, P).astype(jnp.float32), idx3, axis=2), (0, 2, 1))
        shp_fg = jnp.transpose(jnp.take_along_axis(
            Shape.reshape(b, 3, P).astype(jnp.float32), idx3, axis=2), (0, 2, 1))
        anc_fg = anchor_points[fg_inds]                                    # (b, K, 3)
        str_fg = stride_tensor[fg_inds]
        # TODO(synk): bbox_decode is an external helper in the reference repo; standard
        # zyxdhw decode (centre = (anchor + offset) * stride, size = 2 * half-size) assumed.
        ctr = (anc_fg + off_fg) * str_fg
        pred_fg = jnp.concatenate([ctr, 2.0 * shp_fg], axis=-1)           # (b, K, 6)
        tgt_fg = target_bboxes[bi, fg_inds]                                # (b, K, 6)

        diou = diou_fg(pred_fg, tgt_fg)                                    # (b, K)
        nfg = jnp.sum(fg_valid)
        denom = jnp.maximum(nfg, 1.0)
        return jnp.where(nfg > 0, 1.0 - jnp.sum(diou * fg_valid) / denom, 0.0)

    # -- full forward --------------------------------------------------------------------
    def _forward(self, Cls, Shape, Offset, Shape_feat, Offset_feat, annotations):
        b, _, D, H, W = Cls.shape
        P = D * H * W
        A = annotations.shape[1]

        process_ann, target_mask_ig = target_preprocess(annotations, self.crop_size,
                                                        (D, H, W))
        target_mask_ignore = target_mask_ig.reshape(b, P, 1)

        anchor_points, stride_tensor = make_anchors(Cls.shape, self.crop_size, 0.0)

        (target_offset, target_shape, target_bboxes,
         target_scores, mask_ignore_pos) = get_pos_target(
            process_ann, anchor_points, stride_tensor[0].reshape(1, 1, 3),
            self.pos_target_topk, self.pos_ignore_ratio)

        mask_ignore = ((mask_ignore_pos != 0) | (target_mask_ignore != 0)).astype(jnp.int32)

        pred2 = Cls.reshape(b, P).astype(jnp.float32)
        tgt2 = target_scores[..., 0]
        ign2 = mask_ignore[..., 0].astype(jnp.float32)
        cls_pos_loss, cls_neg_loss = self._cls_loss(pred2, tgt2, ign2, A)

        # Foreground-candidate set: contains every positive anchor (<= topk per GT).
        K = max(1, int(min(P, self.pos_target_topk * A)))
        fg_vals, fg_inds = jax.lax.top_k(tgt2, K)
        fg_valid = (fg_vals > 0.0).astype(jnp.float32)

        shape_loss, offset_loss = self._dfl_losses(
            Shape_feat, Offset_feat, target_shape, target_offset,
            mask_ignore, target_scores, fg_inds)
        iou_loss = self._iou_loss(Shape, Offset, anchor_points, stride_tensor,
                                  target_bboxes, fg_inds, fg_valid)
        return cls_pos_loss, cls_neg_loss, shape_loss, offset_loss, iou_loss

    def __call__(self, output, annotations):
        return self._forward_jit(output["Cls"], output["Shape"], output["Offset"],
                                 output["Shape_feat"], output["Offset_feat"],
                                 jnp.asarray(annotations, jnp.float32))


# --------------------------------------------------------------------------------------
if __name__ == "__main__":
    key = jax.random.PRNGKey(0)
    b = 2
    zf = yf = xf = 8
    N = zf * yf * xf
    bins = 36
    crop_size = [32, 32, 32]

    k1, k2, k3, k4, k5 = jax.random.split(key, 5)
    Cls = jax.random.normal(k1, (b, 1, zf, yf, xf), jnp.float32)
    Shape = jax.random.uniform(k2, (b, 3, zf, yf, xf), jnp.float32, 1.0, 5.0)   # half-sizes
    Offset = 0.5 * jax.random.normal(k3, (b, 3, zf, yf, xf), jnp.float32)
    Shape_feat = jax.random.normal(k4, (b, N, 3, bins), jnp.float32)
    Offset_feat = jax.random.normal(k5, (b, N, 3, bins), jnp.float32)

    annotations = jnp.array(
        [[[16.0, 16.0, 16.0, 6.0, 6.0, 6.0, 1.0, 1.0, 1.0, 0.0],
          [-1.0] * 10],
         [[10.0, 12.0, 14.0, 6.0, 8.0, 6.0, 1.0, 1.0, 1.0, 0.0],
          [0.5, 0.5, 0.5, 2.0, 2.0, 2.0, 1.0, 1.0, 1.0, 0.0]]], dtype=jnp.float32)

    output = dict(Cls=Cls, Shape=Shape, Offset=Offset,
                  Shape_feat=Shape_feat, Offset_feat=Offset_feat)

    loss_fn = DetectionLossPallas(crop_size=crop_size)
    losses = loss_fn(output, annotations)
    losses = jax.block_until_ready(losses)
    print("KERNEL_OK")
</pallas_src>

<mosaic_0001>
module attributes {stable_mosaic.version = 11 : i64} {
  func.func @_dist_kernel(%arg0: i32, %arg1: memref<4x3xf32, #tpu.memory_space<vmem>>, %arg2: memref<4x3xf32, #tpu.memory_space<vmem>>, %arg3: memref<3x256xf32, #tpu.memory_space<vmem>>, %arg4: memref<4x256xf32, #tpu.memory_space<vmem>>) attributes {dimension_semantics = [#tpu.dimension_semantics<parallel>], iteration_bounds = array<i64: 2>, scalar_prefetch = 0 : i64, scratch_operands = 0 : i64, tpu.core_type = #tpu.core_type<tc>, window_params = [{pipeline_mode = #tpu.pipeline_mode<synchronous>, transform_indices = @transform_0, window_bounds = array<i64: 4, 3>}, {pipeline_mode = #tpu.pipeline_mode<synchronous>, transform_indices = @transform_1, window_bounds = array<i64: 4, 3>}, {transform_indices = @transform_2, window_bounds = array<i64: 3, 256>}, {transform_indices = @transform_3, window_bounds = array<i64: 4, 256>}]} {
    %cst = arith.constant 0.000000e+00 : f32
    %0 = vector.broadcast %cst : f32 to vector<4x256xf32>
    %c0 = arith.constant 0 : index
    %c0_0 = arith.constant 0 : index
    %1 = vector.load %arg1[%c0, %c0_0] : memref<4x3xf32, #tpu.memory_space<vmem>>, vector<4x1xf32>
    %c0_1 = arith.constant 0 : index
    %c0_2 = arith.constant 0 : index
    %2 = vector.load %arg2[%c0_1, %c0_2] : memref<4x3xf32, #tpu.memory_space<vmem>>, vector<4x1xf32>
    %c0_3 = arith.constant 0 : index
    %c0_4 = arith.constant 0 : index
    %3 = vector.load %arg3[%c0_3, %c0_4] : memref<3x256xf32, #tpu.memory_space<vmem>>, vector<1x256xf32>
    %4 = vector.broadcast %1 : vector<4x1xf32> to vector<4x256xf32>
    %5 = vector.broadcast %3 : vector<1x256xf32> to vector<4x256xf32>
    %6 = arith.subf %4, %5 : vector<4x256xf32>
    %7 = vector.broadcast %2 : vector<4x1xf32> to vector<4x256xf32>
    %8 = arith.mulf %6, %7 : vector<4x256xf32>
    %9 = arith.mulf %8, %8 : vector<4x256xf32>
    %10 = arith.addf %0, %9 : vector<4x256xf32>
    %c0_5 = arith.constant 0 : index
    %c1 = arith.constant 1 : index
    %11 = vector.load %arg1[%c0_5, %c1] : memref<4x3xf32, #tpu.memory_space<vmem>>, vector<4x1xf32>
    %c0_6 = arith.constant 0 : index
    %c1_7 = arith.constant 1 : index
    %12 = vector.load %arg2[%c0_6, %c1_7] : memref<4x3xf32, #tpu.memory_space<vmem>>, vector<4x1xf32>
    %c1_8 = arith.constant 1 : index
    %c0_9 = arith.constant 0 : index
    %13 = vector.load %arg3[%c1_8, %c0_9] : memref<3x256xf32, #tpu.memory_space<vmem>>, vector<1x256xf32>
    %14 = vector.broadcast %11 : vector<4x1xf32> to vector<4x256xf32>
    %15 = vector.broadcast %13 : vector<1x256xf32> to vector<4x256xf32>
    %16 = arith.subf %14, %15 : vector<4x256xf32>
    %17 = vector.broadcast %12 : vector<4x1xf32> to vector<4x256xf32>
    %18 = arith.mulf %16, %17 : vector<4x256xf32>
    %19 = arith.mulf %18, %18 : vector<4x256xf32>
    %20 = arith.addf %10, %19 : vector<4x256xf32>
    %c0_10 = arith.constant 0 : index
    %c2 = arith.constant 2 : index
    %21 = vector.load %arg1[%c0_10, %c2] : memref<4x3xf32, #tpu.memory_space<vmem>>, vector<4x1xf32>
    %c0_11 = arith.constant 0 : index
    %c2_12 = arith.constant 2 : index
    %22 = vector.load %arg2[%c0_11, %c2_12] : memref<4x3xf32, #tpu.memory_space<vmem>>, vector<4x1xf32>
    %c2_13 = arith.constant 2 : index
    %c0_14 = arith.constant 0 : index
    %23 = vector.load %arg3[%c2_13, %c0_14] : memref<3x256xf32, #tpu.memory_space<vmem>>, vector<1x256xf32>
    %24 = vector.broadcast %21 : vector<4x1xf32> to vector<4x256xf32>
    %25 = vector.broadcast %23 : vector<1x256xf32> to vector<4x256xf32>
    %26 = arith.subf %24, %25 : vector<4x256xf32>
    %27 = vector.broadcast %22 : vector<4x1xf32> to vector<4x256xf32>
    %28 = arith.mulf %26, %27 : vector<4x256xf32>
    %29 = arith.mulf %28, %28 : vector<4x256xf32>
    %30 = arith.addf %20, %29 : vector<4x256xf32>
    %cst_15 = arith.constant 0.000000e+00 : f32
    %31 = vector.broadcast %cst_15 : f32 to vector<4x256xf32>
    %32 = arith.subf %31, %30 : vector<4x256xf32>
    %c0_16 = arith.constant 0 : index
    %c0_17 = arith.constant 0 : index
    %33 = vector.load %arg4[%c0_16, %c0_17] : memref<4x256xf32, #tpu.memory_space<vmem>>, vector<4x256xf32>
    tpu.vector_store %arg4[%c0_16, %c0_17], %32 {strides = array<i32>} : memref<4x256xf32, #tpu.memory_space<vmem>>, vector<4x256xf32>,
    return
  }
  func.func @transform_0(%arg0: i32) -> (i32, i32) {
    %c0_i32 = arith.constant 0 : i32
    %c0_i32_0 = arith.constant 0 : i32
    %c0_i32_1 = arith.constant 0 : i32
    return %c0_i32, %c0_i32_0 : i32, i32
  }
  func.func @transform_1(%arg0: i32) -> (i32, i32) {
    %c0_i32 = arith.constant 0 : i32
    %c0_i32_0 = arith.constant 0 : i32
    %c0_i32_1 = arith.constant 0 : i32
    return %c0_i32, %c0_i32_0 : i32, i32
  }
  func.func @transform_2(%arg0: i32) -> (i32, i32) {
    %c0_i32 = arith.constant 0 : i32
    %c0_i32_0 = arith.constant 0 : i32
    return %c0_i32, %arg0 : i32, i32
  }
  func.func @transform_3(%arg0: i32) -> (i32, i32) {
    %c0_i32 = arith.constant 0 : i32
    %c0_i32_0 = arith.constant 0 : i32
    return %c0_i32, %arg0 : i32, i32
  }
}

module attributes {stable_mosaic.version = 11 : i64} {
  func.func @_cls_loss_kernel(%arg0: i32, %arg1: memref<2x256xf32, #tpu.memory_space<vmem>>, %arg2: memref<2x256xf32, #tpu.memory_space<vmem>>, %arg3: memref<2x256xf32, #tpu.memory_space<vmem>>) attributes {dimension_semantics = [#tpu.dimension_semantics<parallel>], iteration_bounds = array<i64: 2>, scalar_prefetch = 0 : i64, scratch_operands = 0 : i64, tpu.core_type = #tpu.core_type<tc>, window_params = [{transform_indices = @transform_0, window_bounds = array<i64: 2, 256>}, {transform_indices = @transform_1, window_bounds = array<i64: 2, 256>}, {transform_indices = @transform_2, window_bounds = array<i64: 2, 256>}]} {
    %c0 = arith.constant 0 : index
    %c0_0 = arith.constant 0 : index
    %0 = vector.load %arg1[%c0, %c0_0] : memref<2x256xf32, #tpu.memory_space<vmem>>, vector<2x256xf32>
    %c0_1 = arith.constant 0 : index
    %c0_2 = arith.constant 0 : index
    %1 = vector.load %arg2[%c0_1, %c0_2] : memref<2x256xf32, #tpu.memory_space<vmem>>, vector<2x256xf32>
    %cst = arith.constant 1.000000e+00 : f32
    %2 = vector.broadcast %cst : f32 to vector<2x256xf32>
    %3 = arith.cmpf oeq, %1, %2 : vector<2x256xf32>
    %cst_3 = arith.constant 3.000000e+00 : f32
    %4 = vector.broadcast %cst_3 : f32 to vector<2x256xf32>
    %5 = arith.cmpf oeq, %1, %4 : vector<2x256xf32>
    %6 = arith.ori %3, %5 : vector<2x256xi1>
    %cst_4 = arith.constant 2.000000e+00 : f32
    %7 = vector.broadcast %cst_4 : f32 to vector<2x256xf32>
    %8 = arith.cmpf oge, %1, %7 : vector<2x256xf32>
    %cst_5 = arith.constant 1.000000e+00 : f32
    %cst_6 = arith.constant 0.000000e+00 : f32
    %9 = vector.broadcast %cst_5 : f32 to vector<2x256xf32>
    %10 = vector.broadcast %cst_6 : f32 to vector<2x256xf32>
    %11 = arith.select %6, %9, %10 : vector<2x256xi1>, vector<2x256xf32>
    %12 = math.absf %0 : vector<2x256xf32>
    %cst_7 = arith.constant 0.000000e+00 : f32
    %13 = vector.broadcast %cst_7 : f32 to vector<2x256xf32>
    %14 = arith.subf %13, %12 : vector<2x256xf32>
    %15 = math.exp %14 : vector<2x256xf32>
    %cst_8 = arith.constant 1.000000e+00 : f32
    %16 = vector.broadcast %cst_8 : f32 to vector<2x256xf32>
    %17 = arith.addf %16, %15 : vector<2x256xf32>
    %cst_9 = arith.constant 1.000000e+00 : f32
    %18 = vector.broadcast %cst_9 : f32 to vector<2x256xf32>
    %19 = arith.divf %18, %17 : vector<2x256xf32>
    %cst_10 = arith.constant 0.000000e+00 : f32
    %20 = vector.broadcast %cst_10 : f32 to vector<2x256xf32>
    %21 = arith.cmpf oge, %0, %20 : vector<2x256xf32>
    %22 = arith.mulf %15, %19 : vector<2x256xf32>
    %23 = arith.select %21, %19, %22 : vector<2x256xi1>, vector<2x256xf32>
    %cst_11 = arith.constant 9.99999974E-5 : f32
    %cst_12 = arith.constant 0.999899983 : f32
    %24 = vector.broadcast %cst_11 : f32 to vector<2x256xf32>
    %25 = arith.maximumf %24, %23 : vector<2x256xf32>
    %26 = vector.broadcast %cst_12 : f32 to vector<2x256xf32>
    %27 = arith.minimumf %26, %25 : vector<2x256xf32>
    %cst_13 = arith.constant 7.500000e-01 : f32
    %cst_14 = arith.constant 2.500000e-01 : f32
    %28 = vector.broadcast %cst_13 : f32 to vector<2x256xf32>
    %29 = vector.broadcast %cst_14 : f32 to vector<2x256xf32>
    %30 = arith.select %6, %28, %29 : vector<2x256xi1>, vector<2x256xf32>
    %cst_15 = arith.constant 1.000000e+00 : f32
    %31 = vector.broadcast %cst_15 : f32 to vector<2x256xf32>
    %32 = arith.subf %31, %27 : vector<2x256xf32>
    %33 = arith.select %6, %32, %27 : vector<2x256xi1>, vector<2x256xf32>
    %34 = arith.mulf %33, %33 : vector<2x256xf32>
    %35 = arith.mulf %30, %34 : vector<2x256xf32>
    %cst_16 = arith.constant 0.000000e+00 : f32
    %36 = vector.broadcast %cst_16 : f32 to vector<2x256xf32>
    %37 = arith.maximumf %0, %36 : vector<2x256xf32>
    %38 = arith.mulf %0, %11 : vector<2x256xf32>
    %39 = arith.subf %37, %38 : vector<2x256xf32>
    %cst_17 = arith.constant 1.000000e+00 : f32
    %40 = vector.broadcast %cst_17 : f32 to vector<2x256xf32>
    %41 = arith.addf %40, %15 : vector<2x256xf32>
    %42 = math.log %41 : vector<2x256xf32>
    %43 = arith.addf %39, %42 : vector<2x256xf32>
    %44 = arith.mulf %35, %43 : vector<2x256xf32>
    %cst_18 = arith.constant 0.000000e+00 : f32
    %45 = vector.broadcast %cst_18 : f32 to vector<2x256xf32>
    %46 = arith.select %8, %45, %44 : vector<2x256xi1>, vector<2x256xf32>
    %cst_19 = arith.constant 8.000000e-01 : f32
    %47 = vector.broadcast %cst_19 : f32 to vector<2x256xf32>
    %48 = arith.cmpf olt, %27, %47 : vector<2x256xf32>
    %49 = arith.andi %48, %6 : vector<2x256xi1>
    %cst_20 = arith.constant 4.000000e+00 : f32
    %50 = vector.broadcast %cst_20 : f32 to vector<2x256xf32>
    %51 = arith.mulf %46, %50 : vector<2x256xf32>
    %52 = arith.select %49, %51, %46 : vector<2x256xi1>, vector<2x256xf32>
    %cst_21 = arith.constant 5.000000e-01 : f32
    %53 = vector.broadcast %cst_21 : f32 to vector<2x256xf32>
    %54 = arith.subf %27, %53 : vector<2x256xf32>
    %cst_22 = arith.constant 2.000000e-01 : f32
    %55 = vector.broadcast %cst_22 : f32 to vector<2x256xf32>
    %56 = arith.divf %54, %55 : vector<2x256xf32>
    %cst_23 = arith.constant 0.000000e+00 : f32
    %cst_24 = arith.constant 1.000000e+00 : f32
    %57 = vector.broadcast %cst_23 : f32 to vector<2x256xf32>
    %58 = arith.maximumf %57, %56 : vector<2x256xf32>
    %59 = vector.broadcast %cst_24 : f32 to vector<2x256xf32>
    %60 = arith.minimumf %59, %58 : vector<2x256xf32>
    %cst_25 = arith.constant 5.000000e-01 : f32
    %61 = vector.broadcast %cst_25 : f32 to vector<2x256xf32>
    %62 = arith.mulf %60, %61 : vector<2x256xf32>
    %cst_26 = arith.constant 1.500000e+00 : f32
    %63 = vector.broadcast %cst_26 : f32 to vector<2x256xf32>
    %64 = arith.addf %63, %62 : vector<2x256xf32>
    %cst_27 = arith.constant 5.000000e-01 : f32
    %65 = vector.broadcast %cst_27 : f32 to vector<2x256xf32>
    %66 = arith.cmpf ogt, %27, %65 : vector<2x256xf32>
    %cst_28 = arith.constant dense<true> : vector<2x256xi1>
    %67 = arith.xori %6, %cst_28 : vector<2x256xi1>
    %68 = arith.andi %66, %67 : vector<2x256xi1>
    %69 = arith.mulf %52, %64 : vector<2x256xf32>
    %70 = arith.select %68, %69, %52 : vector<2x256xi1>, vector<2x256xf32>
    %c0_29 = arith.constant 0 : index
    %c0_30 = arith.constant 0 : index
    %71 = vector.load %arg3[%c0_29, %c0_30] : memref<2x256xf32, #tpu.memory_space<vmem>>, vector<2x256xf32>
    tpu.vector_store %arg3[%c0_29, %c0_30], %70 {strides = array<i32>} : memref<2x256xf32, #tpu.memory_space<vmem>>, vector<2x256xf32>,
    return
  }
  func.func @transform_0(%arg0: i32) -> (i32, i32) {
    %c0_i32 = arith.constant 0 : i32
    %c0_i32_0 = arith.constant 0 : i32
    return %c0_i32, %arg0 : i32, i32
  }
  func.func @transform_1(%arg0: i32) -> (i32, i32) {
    %c0_i32 = arith.constant 0 : i32
    %c0_i32_0 = arith.constant 0 : i32
    return %c0_i32, %arg0 : i32, i32
  }
  func.func @transform_2(%arg0: i32) -> (i32, i32) {
    %c0_i32 = arith.constant 0 : i32
    %c0_i32_0 = arith.constant 0 : i32
    return %c0_i32, %arg0 : i32, i32
  }
}

module attributes {stable_mosaic.version = 11 : i64} {
  func.func @_diou_kernel(%arg0: memref<6x1x128xf32, #tpu.memory_space<vmem>>, %arg1: memref<6x1x128xf32, #tpu.memory_space<vmem>>, %arg2: memref<1x128xf32, #tpu.memory_space<vmem>>) attributes {dimension_semantics = [], scalar_prefetch = 0 : i64, scratch_operands = 0 : i64, tpu.core_type = #tpu.core_type<tc>} {
    %c0 = arith.constant 0 : index
    %c0_0 = arith.constant 0 : index
    %c0_1 = arith.constant 0 : index
    %0 = vector.load %arg0[%c0, %c0_0, %c0_1] : memref<6x1x128xf32, #tpu.memory_space<vmem>>, vector<1x1x128xf32>
    %1 = vector.shape_cast %0 : vector<1x1x128xf32> to vector<1x128xf32>
    %c1 = arith.constant 1 : index
    %c0_2 = arith.constant 0 : index
    %c0_3 = arith.constant 0 : index
    %2 = vector.load %arg0[%c1, %c0_2, %c0_3] : memref<6x1x128xf32, #tpu.memory_space<vmem>>, vector<1x1x128xf32>
    %3 = vector.shape_cast %2 : vector<1x1x128xf32> to vector<1x128xf32>
    %c2 = arith.constant 2 : index
    %c0_4 = arith.constant 0 : index
    %c0_5 = arith.constant 0 : index
    %4 = vector.load %arg0[%c2, %c0_4, %c0_5] : memref<6x1x128xf32, #tpu.memory_space<vmem>>, vector<1x1x128xf32>
    %5 = vector.shape_cast %4 : vector<1x1x128xf32> to vector<1x128xf32>
    %c3 = arith.constant 3 : index
    %c0_6 = arith.constant 0 : index
    %c0_7 = arith.constant 0 : index
    %6 = vector.load %arg0[%c3, %c0_6, %c0_7] : memref<6x1x128xf32, #tpu.memory_space<vmem>>, vector<1x1x128xf32>
    %7 = vector.shape_cast %6 : vector<1x1x128xf32> to vector<1x128xf32>
    %c4 = arith.constant 4 : index
    %c0_8 = arith.constant 0 : index
    %c0_9 = arith.constant 0 : index
    %8 = vector.load %arg0[%c4, %c0_8, %c0_9] : memref<6x1x128xf32, #tpu.memory_space<vmem>>, vector<1x1x128xf32>
    %9 = vector.shape_cast %8 : vector<1x1x128xf32> to vector<1x128xf32>
    %c5 = arith.constant 5 : index
    %c0_10 = arith.constant 0 : index
    %c0_11 = arith.constant 0 : index
    %10 = vector.load %arg0[%c5, %c0_10, %c0_11] : memref<6x1x128xf32, #tpu.memory_space<vmem>>, vector<1x1x128xf32>
    %11 = vector.shape_cast %10 : vector<1x1x128xf32> to vector<1x128xf32>
    %c0_12 = arith.constant 0 : index
    %c0_13 = arith.constant 0 : index
    %c0_14 = arith.constant 0 : index
    %12 = vector.load %arg1[%c0_12, %c0_13, %c0_14] : memref<6x1x128xf32, #tpu.memory_space<vmem>>, vector<1x1x128xf32>
    %13 = vector.shape_cast %12 : vector<1x1x128xf32> to vector<1x128xf32>
    %c1_15 = arith.constant 1 : index
    %c0_16 = arith.constant 0 : index
    %c0_17 = arith.constant 0 : index
    %14 = vector.load %arg1[%c1_15, %c0_16, %c0_17] : memref<6x1x128xf32, #tpu.memory_space<vmem>>, vector<1x1x128xf32>
    %15 = vector.shape_cast %14 : vector<1x1x128xf32> to vector<1x128xf32>
    %c2_18 = arith.constant 2 : index
    %c0_19 = arith.constant 0 : index
    %c0_20 = arith.constant 0 : index
    %16 = vector.load %arg1[%c2_18, %c0_19, %c0_20] : memref<6x1x128xf32, #tpu.memory_space<vmem>>, vector<1x1x128xf32>
    %17 = vector.shape_cast %16 : vector<1x1x128xf32> to vector<1x128xf32>
    %c3_21 = arith.constant 3 : index
    %c0_22 = arith.constant 0 : index
    %c0_23 = arith.constant 0 : index
    %18 = vector.load %arg1[%c3_21, %c0_22, %c0_23] : memref<6x1x128xf32, #tpu.memory_space<vmem>>, vector<1x1x128xf32>
    %19 = vector.shape_cast %18 : vector<1x1x128xf32> to vector<1x128xf32>
    %c4_24 = arith.constant 4 : index
    %c0_25 = arith.constant 0 : index
    %c0_26 = arith.constant 0 : index
    %20 = vector.load %arg1[%c4_24, %c0_25, %c0_26] : memref<6x1x128xf32, #tpu.memory_space<vmem>>, vector<1x1x128xf32>
    %21 = vector.shape_cast %20 : vector<1x1x128xf32> to vector<1x128xf32>
    %c5_27 = arith.constant 5 : index
    %c0_28 = arith.constant 0 : index
    %c0_29 = arith.constant 0 : index
    %22 = vector.load %arg1[%c5_27, %c0_28, %c0_29] : memref<6x1x128xf32, #tpu.memory_space<vmem>>, vector<1x1x128xf32>
    %23 = vector.shape_cast %22 : vector<1x1x128xf32> to vector<1x128xf32>
    %cst = arith.constant 5.000000e-01 : f32
    %24 = vector.broadcast %cst : f32 to vector<1x128xf32>
    %25 = arith.mulf %7, %24 : vector<1x128xf32>
    %26 = arith.subf %1, %25 : vector<1x128xf32>
    %cst_30 = arith.constant 5.000000e-01 : f32
    %27 = vector.broadcast %cst_30 : f32 to vector<1x128xf32>
    %28 = arith.mulf %7, %27 : vector<1x128xf32>
    %29 = arith.addf %1, %28 : vector<1x128xf32>
    %cst_31 = arith.constant 5.000000e-01 : f32
    %30 = vector.broadcast %cst_31 : f32 to vector<1x128xf32>
    %31 = arith.mulf %9, %30 : vector<1x128xf32>
    %32 = arith.subf %3, %31 : vector<1x128xf32>
    %cst_32 = arith.constant 5.000000e-01 : f32
    %33 = vector.broadcast %cst_32 : f32 to vector<1x128xf32>
    %34 = arith.mulf %9, %33 : vector<1x128xf32>
    %35 = arith.addf %3, %34 : vector<1x128xf32>
    %cst_33 = arith.constant 5.000000e-01 : f32
    %36 = vector.broadcast %cst_33 : f32 to vector<1x128xf32>
    %37 = arith.mulf %11, %36 : vector<1x128xf32>
    %38 = arith.subf %5, %37 : vector<1x128xf32>
    %cst_34 = arith.constant 5.000000e-01 : f32
    %39 = vector.broadcast %cst_34 : f32 to vector<1x128xf32>
    %40 = arith.mulf %11, %39 : vector<1x128xf32>
    %41 = arith.addf %5, %40 : vector<1x128xf32>
    %cst_35 = arith.constant 5.000000e-01 : f32
    %42 = vector.broadcast %cst_35 : f32 to vector<1x128xf32>
    %43 = arith.mulf %19, %42 : vector<1x128xf32>
    %44 = arith.subf %13, %43 : vector<1x128xf32>
    %cst_36 = arith.constant 5.000000e-01 : f32
    %45 = vector.broadcast %cst_36 : f32 to vector<1x128xf32>
    %46 = arith.mulf %19, %45 : vector<1x128xf32>
    %47 = arith.addf %13, %46 : vector<1x128xf32>
    %cst_37 = arith.constant 5.000000e-01 : f32
    %48 = vector.broadcast %cst_37 : f32 to vector<1x128xf32>
    %49 = arith.mulf %21, %48 : vector<1x128xf32>
    %50 = arith.subf %15, %49 : vector<1x128xf32>
    %cst_38 = arith.constant 5.000000e-01 : f32
    %51 = vector.broadcast %cst_38 : f32 to vector<1x128xf32>
    %52 = arith.mulf %21, %51 : vector<1x128xf32>
    %53 = arith.addf %15, %52 : vector<1x128xf32>
    %cst_39 = arith.constant 5.000000e-01 : f32
    %54 = vector.broadcast %cst_39 : f32 to vector<1x128xf32>
    %55 = arith.mulf %23, %54 : vector<1x128xf32>
    %56 = arith.subf %17, %55 : vector<1x128xf32>
    %cst_40 = arith.constant 5.000000e-01 : f32
    %57 = vector.broadcast %cst_40 : f32 to vector<1x128xf32>
    %58 = arith.mulf %23, %57 : vector<1x128xf32>
    %59 = arith.addf %17, %58 : vector<1x128xf32>
    %60 = arith.subf %41, %38 : vector<1x128xf32>
    %61 = arith.subf %35, %32 : vector<1x128xf32>
    %62 = arith.subf %29, %26 : vector<1x128xf32>
    %63 = arith.subf %59, %56 : vector<1x128xf32>
    %64 = arith.subf %53, %50 : vector<1x128xf32>
    %65 = arith.subf %47, %44 : vector<1x128xf32>
    %66 = arith.minimumf %41, %59 : vector<1x128xf32>
    %67 = arith.maximumf %38, %56 : vector<1x128xf32>
    %68 = arith.subf %66, %67 : vector<1x128xf32>
    %cst_41 = arith.constant 0.000000e+00 : f32
    %69 = vector.broadcast %cst_41 : f32 to vector<1x128xf32>
    %70 = arith.maximumf %68, %69 : vector<1x128xf32>
    %71 = arith.minimumf %35, %53 : vector<1x128xf32>
    %72 = arith.maximumf %32, %50 : vector<1x128xf32>
    %73 = arith.subf %71, %72 : vector<1x128xf32>
    %cst_42 = arith.constant 0.000000e+00 : f32
    %74 = vector.broadcast %cst_42 : f32 to vector<1x128xf32>
    %75 = arith.maximumf %73, %74 : vector<1x128xf32>
    %76 = arith.mulf %70, %75 : vector<1x128xf32>
    %77 = arith.minimumf %29, %47 : vector<1x128xf32>
    %78 = arith.maximumf %26, %44 : vector<1x128xf32>
    %79 = arith.subf %77, %78 : vector<1x128xf32>
    %cst_43 = arith.constant 0.000000e+00 : f32
    %80 = vector.broadcast %cst_43 : f32 to vector<1x128xf32>
    %81 = arith.maximumf %79, %80 : vector<1x128xf32>
    %82 = arith.mulf %76, %81 : vector<1x128xf32>
    %cst_44 = arith.constant 1.000000e-07 : f32
    %83 = vector.broadcast %cst_44 : f32 to vector<1x128xf32>
    %84 = arith.addf %82, %83 : vector<1x128xf32>
    %85 = arith.mulf %60, %61 : vector<1x128xf32>
    %86 = arith.mulf %85, %62 : vector<1x128xf32>
    %87 = arith.mulf %63, %64 : vector<1x128xf32>
    %88 = arith.mulf %87, %65 : vector<1x128xf32>
    %89 = arith.addf %86, %88 : vector<1x128xf32>
    %90 = arith.subf %89, %84 : vector<1x128xf32>
    %91 = arith.divf %84, %90 : vector<1x128xf32>
    %92 = arith.maximumf %41, %59 : vector<1x128xf32>
    %93 = arith.minimumf %38, %56 : vector<1x128xf32>
    %94 = arith.subf %92, %93 : vector<1x128xf32>
    %95 = arith.maximumf %35, %53 : vector<1x128xf32>
    %96 = arith.minimumf %32, %50 : vector<1x128xf32>
    %97 = arith.subf %95, %96 : vector<1x128xf32>
    %98 = arith.maximumf %29, %47 : vector<1x128xf32>
    %99 = arith.minimumf %26, %44 : vector<1x128xf32>
    %100 = arith.subf %98, %99 : vector<1x128xf32>
    %101 = arith.mulf %94, %94 : vector<1x128xf32>
    %102 = arith.mulf %97, %97 : vector<1x128xf32>
    %103 = arith.addf %101, %102 : vector<1x128xf32>
    %104 = arith.mulf %100, %100 : vector<1x128xf32>
    %105 = arith.addf %103, %104 : vector<1x128xf32>
    %cst_45 = arith.constant 1.000000e-07 : f32
    %106 = vector.broadcast %cst_45 : f32 to vector<1x128xf32>
    %107 = arith.addf %105, %106 : vector<1x128xf32>
    %108 = arith.addf %56, %59 : vector<1x128xf32>
    %109 = arith.subf %108, %38 : vector<1x128xf32>
    %110 = arith.subf %109, %41 : vector<1x128xf32>
    %111 = arith.mulf %110, %110 : vector<1x128xf32>
    %112 = arith.addf %50, %53 : vector<1x128xf32>
    %113 = arith.subf %112, %32 : vector<1x128xf32>
    %114 = arith.subf %113, %35 : vector<1x128xf32>
    %115 = arith.mulf %114, %114 : vector<1x128xf32>
    %116 = arith.addf %111, %115 : vector<1x128xf32>
    %117 = arith.addf %44, %47 : vector<1x128xf32>
    %118 = arith.subf %117, %26 : vector<1x128xf32>
    %119 = arith.subf %118, %29 : vector<1x128xf32>
    %120 = arith.mulf %119, %119 : vector<1x128xf32>
    %121 = arith.addf %116, %120 : vector<1x128xf32>
    %cst_46 = arith.constant 4.000000e+00 : f32
    %122 = vector.broadcast %cst_46 : f32 to vector<1x128xf32>
    %123 = arith.divf %121, %122 : vector<1x128xf32>
    %124 = arith.divf %123, %107 : vector<1x128xf32>
    %125 = arith.subf %91, %124 : vector<1x128xf32>
    %c0_47 = arith.constant 0 : index
    %c0_48 = arith.constant 0 : index
    %126 = vector.load %arg2[%c0_47, %c0_48] : memref<1x128xf32, #tpu.memory_space<vmem>>, vector<1x128xf32>
    tpu.vector_store %arg2[%c0_47, %c0_48], %125 {strides = array<i32>} : memref<1x128xf32, #tpu.memory_space<vmem>>, vector<1x128xf32>,
    return
  }
}

module attributes {stable_mosaic.version = 11 : i64} {
  func.func @_dfl_kernel(%arg0: i32, %arg1: memref<36x128xf32, #tpu.memory_space<vmem>>, %arg2: memref<1x128xf32, #tpu.memory_space<vmem>>, %arg3: memref<1x128xf32, #tpu.memory_space<vmem>>) attributes {dimension_semantics = [#tpu.dimension_semantics<parallel>], iteration_bounds = array<i64: 2>, scalar_prefetch = 0 : i64, scratch_operands = 0 : i64, tpu.core_type = #tpu.core_type<tc>, window_params = [{transform_indices = @transform_0, window_bounds = array<i64: 36, 128>}, {transform_indices = @transform_1, window_bounds = array<i64: 1, 128>}, {transform_indices = @transform_2, window_bounds = array<i64: 1, 128>}]} {
    %c0 = arith.constant 0 : index
    %c0_0 = arith.constant 0 : index
    %0 = vector.load %arg1[%c0, %c0_0] : memref<36x128xf32, #tpu.memory_space<vmem>>, vector<36x128xf32>
    %c0_1 = arith.constant 0 : index
    %c0_2 = arith.constant 0 : index
    %1 = vector.load %arg2[%c0_1, %c0_2] : memref<1x128xf32, #tpu.memory_space<vmem>>, vector<1x128xf32>
    %cst = arith.constant 0.000000e+00 : f32
    %2 = vector.broadcast %cst : f32 to vector<1x128xf32>
    %3 = arith.subf %1, %2 : vector<1x128xf32>
    %cst_3 = arith.constant 1.000000e+00 : f32
    %4 = vector.broadcast %cst_3 : f32 to vector<1x128xf32>
    %5 = arith.mulf %3, %4 : vector<1x128xf32>
    %6 = math.ceil %5 : vector<1x128xf32>
    %cst_4 = arith.constant 0.000000e+00 : f32
    %cst_5 = arith.constant 3.600000e+01 : f32
    %7 = vector.broadcast %cst_4 : f32 to vector<1x128xf32>
    %8 = arith.maximumf %7, %6 : vector<1x128xf32>
    %9 = vector.broadcast %cst_5 : f32 to vector<1x128xf32>
    %10 = arith.minimumf %9, %8 : vector<1x128xf32>
    %11 = arith.fptosi %10 : vector<1x128xf32> to vector<1x128xi32>
    %c1_i32 = arith.constant 1 : i32
    %12 = vector.broadcast %c1_i32 : i32 to vector<1x128xi32>
    %13 = arith.subi %11, %12 : vector<1x128xi32>
    %c0_i32 = arith.constant 0 : i32
    %14 = vector.broadcast %c0_i32 : i32 to vector<1x128xi32>
    %15 = arith.cmpi slt, %13, %14 : vector<1x128xi32>
    %c36_i32 = arith.constant 36 : i32
    %16 = vector.broadcast %c36_i32 : i32 to vector<1x128xi32>
    %17 = arith.addi %13, %16 : vector<1x128xi32>
    %18 = arith.select %15, %17, %13 : vector<1x128xi1>, vector<1x128xi32>
    %c36_i32_6 = arith.constant 36 : i32
    %19 = vector.broadcast %c36_i32_6 : i32 to vector<1x128xi32>
    %20 = arith.cmpi sge, %11, %19 : vector<1x128xi32>
    %c36_i32_7 = arith.constant 36 : i32
    %21 = vector.broadcast %c36_i32_7 : i32 to vector<1x128xi32>
    %22 = arith.subi %11, %21 : vector<1x128xi32>
    %23 = arith.select %20, %22, %11 : vector<1x128xi1>, vector<1x128xi32>
    %24 = arith.sitofp %18 : vector<1x128xi32> to vector<1x128xf32>
    %cst_8 = arith.constant 1.000000e+00 : f32
    %25 = vector.broadcast %cst_8 : f32 to vector<1x128xf32>
    %26 = arith.mulf %25, %24 : vector<1x128xf32>
    %cst_9 = arith.constant 0.000000e+00 : f32
    %27 = vector.broadcast %cst_9 : f32 to vector<1x128xf32>
    %28 = arith.addf %27, %26 : vector<1x128xf32>
    %29 = arith.sitofp %23 : vector<1x128xi32> to vector<1x128xf32>
    %cst_10 = arith.constant 1.000000e+00 : f32
    %30 = vector.broadcast %cst_10 : f32 to vector<1x128xf32>
    %31 = arith.mulf %30, %29 : vector<1x128xf32>
    %cst_11 = arith.constant 0.000000e+00 : f32
    %32 = vector.broadcast %cst_11 : f32 to vector<1x128xf32>
    %33 = arith.addf %32, %31 : vector<1x128xf32>
    %34 = arith.subf %33, %1 : vector<1x128xf32>
    %35 = arith.subf %1, %28 : vector<1x128xf32>
    %36 = tpu.iota {dimensions = array<i32: 0>} : vector<36x1xi32>
    %37 = vector.broadcast %36 : vector<36x1xi32> to vector<36x128xi32>
    %38 = vector.broadcast %18 : vector<1x128xi32> to vector<36x128xi32>
    %39 = arith.cmpi eq, %37, %38 : vector<36x128xi32>
    %cst_12 = arith.constant 0.000000e+00 : f32
    %40 = vector.shape_cast %34 : vector<1x128xf32> to vector<1x128xf32>
    %41 = vector.broadcast %40 : vector<1x128xf32> to vector<36x128xf32>
    %42 = vector.broadcast %cst_12 : f32 to vector<36x128xf32>
    %43 = arith.select %39, %41, %42 : vector<36x128xi1>, vector<36x128xf32>
    %44 = vector.broadcast %36 : vector<36x1xi32> to vector<36x128xi32>
    %45 = vector.broadcast %23 : vector<1x128xi32> to vector<36x128xi32>
    %46 = arith.cmpi eq, %44, %45 : vector<36x128xi32>
    %cst_13 = arith.constant 0.000000e+00 : f32
    %47 = vector.shape_cast %35 : vector<1x128xf32> to vector<1x128xf32>
    %48 = vector.broadcast %47 : vector<1x128xf32> to vector<36x128xf32>
    %49 = vector.broadcast %cst_13 : f32 to vector<36x128xf32>
    %50 = arith.select %46, %48, %49 : vector<36x128xi1>, vector<36x128xf32>
    %51 = arith.addf %43, %50 : vector<36x128xf32>
    %cst_14 = arith.constant dense<0xFF800000> : vector<128xf32>
    %52 = vector.multi_reduction <maximumf>, %0, %cst_14 [0] : vector<36x128xf32> to vector<128xf32>
    %53 = vector.shape_cast %52 : vector<128xf32> to vector<1x128xf32>
    %54 = vector.broadcast %53 : vector<1x128xf32> to vector<36x128xf32>
    %55 = arith.subf %0, %54 : vector<36x128xf32>
    %56 = math.exp %55 : vector<36x128xf32>
    %cst_15 = arith.constant dense<0.000000e+00> : vector<128xf32>
    %57 = vector.multi_reduction <add>, %56, %cst_15 [0] : vector<36x128xf32> to vector<128xf32>
    %58 = vector.shape_cast %57 : vector<128xf32> to vector<1x128xf32>
    %59 = math.log %58 : vector<1x128xf32>
    %60 = arith.addf %53, %59 : vector<1x128xf32>
    %61 = arith.addf %34, %35 : vector<1x128xf32>
    %62 = arith.mulf %60, %61 : vector<1x128xf32>
    %63 = arith.mulf %0, %51 : vector<36x128xf32>
    %cst_16 = arith.constant dense<0.000000e+00> : vector<128xf32>
    %64 = vector.multi_reduction <add>, %63, %cst_16 [0] : vector<36x128xf32> to vector<128xf32>
    %65 = vector.shape_cast %64 : vector<128xf32> to vector<1x128xf32>
    %66 = arith.subf %62, %65 : vector<1x128xf32>
    %c0_17 = arith.constant 0 : index
    %c0_18 = arith.constant 0 : index
    %67 = vector.load %arg3[%c0_17, %c0_18] : memref<1x128xf32, #tpu.memory_space<vmem>>, vector<1x128xf32>
    tpu.vector_store %arg3[%c0_17, %c0_18], %66 {strides = array<i32>} : memref<1x128xf32, #tpu.memory_space<vmem>>, vector<1x128xf32>,
    return
  }
  func.func @transform_0(%arg0: i32) -> (i32, i32) {
    %c0_i32 = arith.constant 0 : i32
    %c0_i32_0 = arith.constant 0 : i32
    return %c0_i32, %arg0 : i32, i32
  }
  func.func @transform_1(%arg0: i32) -> (i32, i32) {
    %c0_i32 = arith.constant 0 : i32
    %c0_i32_0 = arith.constant 0 : i32
    return %c0_i32, %arg0 : i32, i32
  }
  func.func @transform_2(%arg0: i32) -> (i32, i32) {
    %c0_i32 = arith.constant 0 : i32
    %c0_i32_0 = arith.constant 0 : i32
    return %c0_i32, %arg0 : i32, i32
  }
}

</mosaic_0001>

<llo_original>
// kernel: _forward.4
$region0: #{_forward.4}
  #allocation0 [shape = 'u32[]', space=smem, size = 0x4, offset = 0x4, fixed_abs, tag = 'smem constant byte address 0x4 - core index']
  #allocation1 [shape = 'u32[144,128]{1,0:T(1,128)}', space=vmem, size = 0x12000, scoped, tag = 'internal scratch']
  %s0 = inlined_call_operand.vmem [shape: f32[4,3], index: 0, kind: input, shape index: {}]
  %s1 = inlined_call_operand.vmem [shape: f32[4,3], index: 1, kind: input, shape index: {}]
  %s2 = inlined_call_operand.vmem [shape: f32[3,512], index: 2, kind: input, shape index: {}]
  %s3 = inlined_call_operand.vmem [shape: f32[4,512], index: 3, kind: output, shape index: {}]
  %s4 = sld [smem:[#allocation0]]
  $region45: #{_forward.4} parent=0
    _
  %s6 = ssub.s32 1, %s4
  %s7 = scalar_select 0, %s6, %s4
  loop: start=0, step=1, limit=4
  $region2: #{_forward.4} parent=0 // loop_pre_header
    _
  $region3: #{_forward.4} parent=0 // loop_header
    %s9 = sphi 0, %s13
    %p10 = scmp.ge.s32.totalorder %s9, 4
    %s17 = sphi 0, %s17
    %s19 = sphi 0, %s17
    %s20 = sphi 0, %s19
    %s34 = sphi 0, %s20
    %s38 = sphi 0, %s38
    %s40 = sphi 0, %s38
    %s41 = sphi 0, %s40
    %s55 = sphi 0, %s41
    %s61 = sphi 0, %s63
    %s64 = sphi 0, %s61
    %s65 = sphi 0, %s64
    %s81 = sphi 0, %s65
    %s87 = sphi 0, %s89
    %s90 = sphi 0, %s87
    %s91 = sphi 0, %s90
    %s107 = sphi 0, %s91
  $region4: #{_forward.4} parent=0 // loop_header_branch
    %12 = sbr.rel (%p10) target = $region8
  $region5: #{_forward.4} parent=0 // loop_body
    %s14 = ssub.s32 %s9, 1
    %s15 = ssub.s32 %s9, 2
    %s16 = sadd.s32 %s9, 1
    %s18 = sadd.s32 %s17, 1
    %p21 = scmp.eq.s32.totalorder %s9, 1
    %p22 = scmp.ne.s32.totalorder %s17, %s19
    %p23 = scmp.eq.s32.totalorder %s9, 0
    %p24 = por %p22, %p23
    %p25 = scmp.ne.s32.totalorder %s17, %s19
    %p26 = scmp.eq.s32.totalorder %s14, 1
    %p27 = por %p25, %p26
    %p28 = scmp.ne.s32.totalorder %s19, %s20
    %p29 = scmp.eq.s32.totalorder %s14, 0
    %p30 = por %p28, %p29
    %p31 = scmp.ne.s32.totalorder %s19, %s20
    %p32 = scmp.eq.s32.totalorder %s15, 1
    %p33 = por %p31, %p32
    %p35 = scmp.ne.s32.totalorder %s20, %s34
    %p36 = scmp.eq.s32.totalorder %s15, 0
    %p37 = por %p35, %p36
    %s39 = sadd.s32 %s38, 1
    %p42 = scmp.eq.s32.totalorder %s9, 1
    %p43 = scmp.ne.s32.totalorder %s38, %s40
    %p44 = scmp.eq.s32.totalorder %s9, 0
    %p45 = por %p43, %p44
    %p46 = scmp.ne.s32.totalorder %s38, %s40
    %p47 = scmp.eq.s32.totalorder %s14, 1
    %p48 = por %p46, %p47
    %p49 = scmp.ne.s32.totalorder %s40, %s41
    %p50 = scmp.eq.s32.totalorder %s14, 0
    %p51 = por %p49, %p50
    %p52 = scmp.ne.s32.totalorder %s40, %s41
    %p53 = scmp.eq.s32.totalorder %s15, 1
    %p54 = por %p52, %p53
    %p56 = scmp.ne.s32.totalorder %s41, %s55
    %p57 = scmp.eq.s32.totalorder %s15, 0
    %p58 = por %p56, %p57
    %s59 = ssub.s32 %s9, %s16
    %p60 = scmp.eq.s32.totalorder %s59, 0
    %s62 = sadd.s32 %s61, 1
    %s63 = scalar_select %p60, %s61, %s62
    %p66 = pneg %p60
    %p67 = scmp.eq.s32.totalorder %s9, 1
    %p68 = por %p66, %p67
    %p69 = scmp.ne.s32.totalorder %s61, %s64
    %p70 = scmp.eq.s32.totalorder %s9, 0
    %p71 = por %p69, %p70
    %p72 = scmp.ne.s32.totalorder %s61, %s64
    %p73 = scmp.eq.s32.totalorder %s14, 1
    %p74 = por %p72, %p73
    %p75 = scmp.ne.s32.totalorder %s64, %s65
    %p76 = scmp.eq.s32.totalorder %s14, 0
    %p77 = por %p75, %p76
    %p78 = scmp.ne.s32.totalorder %s64, %s65
    %p79 = scmp.eq.s32.totalorder %s15, 1
    %p80 = por %p78, %p79
    %p82 = scmp.ne.s32.totalorder %s65, %s81
    %p83 = scmp.eq.s32.totalorder %s15, 0
    %p84 = por %p82, %p83
    %s85 = ssub.s32 %s9, %s16
    %p86 = scmp.eq.s32.totalorder %s85, 0
    %s88 = sadd.s32 %s87, 1
    %s89 = scalar_select %p86, %s87, %s88
    %p92 = pneg %p86
    %p93 = scmp.eq.s32.totalorder %s9, 1
    %p94 = por %p92, %p93
    %p95 = scmp.ne.s32.totalorder %s87, %s90
    %p96 = scmp.eq.s32.totalorder %s9, 0
    %p97 = por %p95, %p96
    %p98 = scmp.ne.s32.totalorder %s87, %s90
    %p99 = scmp.eq.s32.totalorder %s14, 1
    %p100 = por %p98, %p99
    %p101 = scmp.ne.s32.totalorder %s90, %s91
    %p102 = scmp.eq.s32.totalorder %s14, 0
    %p103 = por %p101, %p102
    %p104 = scmp.ne.s32.totalorder %s90, %s91
    %p105 = scmp.eq.s32.totalorder %s15, 1
    %p106 = por %p104, %p105
    %p108 = scmp.ne.s32.totalorder %s91, %s107
    %p109 = scmp.eq.s32.totalorder %s15, 0
    %p110 = por %p108, %p109
    %p111 = scmp.le.s32.totalorder 1, %s9
    %p112 = scmp.lt.s32.totalorder %s9, 3
    %p113 = pnand %p111, %p112
    %p114 = pneg %p113
    // Predicated region
    $region9: #{_forward.4} parent=5 // pred_check
      _
    $region10: #{_forward.4} parent=5 // pred_check_branch
      %116 = sbr.rel (%p113) target = $region12
    $region11: #{_forward.4} parent=5 // pred_region
      %s117 = ssub.s32 %s9, 1
      // Predicated region
      $region13: #{_forward.4} parent=11 // pred_check
        %p118 = pneg %p30
      $region14: #{_forward.4} parent=11 // pred_check_branch
        %120 = sbr.rel (%p118) target = $region16
      $region15: #{_forward.4} parent=11 // pred_region
        _
      $region16: #{_forward.4} parent=11 // pred_fallthru
        _
      // Predicated region
      $region17: #{_forward.4} parent=11 // pred_check
        %p121 = pneg %p51
      $region18: #{_forward.4} parent=11 // pred_check_branch
        %123 = sbr.rel (%p121) target = $region20
      $region19: #{_forward.4} parent=11 // pred_region
        _
      $region20: #{_forward.4} parent=11 // pred_fallthru
        _
    $region12: #{_forward.4} parent=5 // pred_fallthru
      _
    %p124 = scmp.lt.s32.totalorder %s9, 2
    // Predicated region
    $region21: #{_forward.4} parent=5 // pred_check
      %p125 = pneg %p124
    $region22: #{_forward.4} parent=5 // pred_check_branch
      %127 = sbr.rel (%p125) target = $region24
    $region23: #{_forward.4} parent=5 // pred_region
      // Predicated region
      $region25: #{_forward.4} parent=23 // pred_check
        %p128 = pneg %p71
      $region26: #{_forward.4} parent=23 // pred_check_branch
        %130 = sbr.rel (%p128) target = $region28
      $region27: #{_forward.4} parent=23 // pred_region
        %s131 = smul.u32 2, %s9
        %p132 = scmp.lt.s32.totalorder %s131, 3
        %s133 = scalar_select %p132, %s131, 3
        %s134 = smul.addr %s133, 4
        %s135 = scalar_lea.vmem %s2, %s134
        %s136 = smul.u32 2, %s9
      $region28: #{_forward.4} parent=23 // pred_fallthru
        _
    $region24: #{_forward.4} parent=5 // pred_fallthru
      _
    %p137 = scmp.le.s32.totalorder 1, %s9
    %p138 = scmp.lt.s32.totalorder %s9, 3
    %p139 = pnand %p137, %p138
    %p140 = pneg %p139
    // Predicated region
    $region29: #{_forward.4} parent=5 // pred_check
      _
    $region30: #{_forward.4} parent=5 // pred_check_branch
      %142 = sbr.rel (%p139) target = $region32
    $region31: #{_forward.4} parent=5 // pred_region
      %s143 = ssub.s32 %s9, 1
      %p144 = pneg %p30
      %p145 = pneg %p27
      %p146 = pneg %p51
      %p147 = pneg %p48
      %s148 = smul.u32 2, %s14
      %p149 = scmp.lt.s32.totalorder %s148, 3
      %s150 = scalar_select %p149, %s148, 3
      %s151 = smul.addr %s150, 4
      %s152 = scalar_lea.vmem %s2, %s151
      %p153 = pneg %p77
      %p154 = pneg %p74
      %p155 = pneg %p103
      %p156 = pneg %p100
      %s157 = smul.u32 2, %s14
      %p158 = scmp.lt.s32.totalorder %s157, 3
      %s159 = scalar_select %p158, %s157, 3
      %s160 = smul.addr %s159, 4
      %s161 = scalar_lea.vmem %s3, %s160
      %s162 = smul.u32 2, %s14
      %p163 = scmp.lt.s32.totalorder %s162, 3
      %s164 = scalar_select %p163, %s162, 3
      %s165 = smul.addr %s164, 4
      %s166 = scalar_lea.vmem %s2, %s165
      %s167 = smul.u32 2, %s14
      %s168 = smul.u32 2, %s14
      %p169 = scmp.lt.s32.totalorder %s168, 3
      %s170 = scalar_select %p169, %s168, 3
      %s171 = smul.addr %s170, 4
      %s172 = scalar_lea.vmem %s3, %s171
      %s173 = smul.u32 2, %s14
      %v174 = vld [vmem:[%s0] sm:$0xf]
      %v175 = vld [vmem:[%s1] sm:$0xf]
      %v176 = vld [vmem:[%s166] ss:$4 sm:$0x3]
      %178 = vset.pattern.permute.xlu0 0
      %179 = vperm.xlu0 %178, %v174
      %v180 = vpop.permute.xlu0 %179
      %v183 = vlaneseq
      %v184 = vshrl.u32 %v183, 7
      %v185 = vsub.s32 0, %v184
      %v186 = vrot.slane %v176, %v185
      %v187 = vlaneseq
      %v188 = vshrl.u32 %v187, 7
      %v189 = vsub.s32 1, %v188
      %v190 = vrot.slane %v176, %v189
      %v193 = vsub.f32 %v180, %v186
      %v194 = vsub.f32 %v180, %v190
      %196 = vset.pattern.permute.xlu0 0
      %197 = vperm.xlu0 %196, %v175
      %v198 = vpop.permute.xlu0 %197
      %v200 = vmul.f32 %v193, %v198
      %v201 = vmul.f32 %v194, %v198
      %v202 = vmul.f32 %v200, %v200
      %v203 = vmul.f32 %v201, %v201
      %v204 = vadd.f32 %v202, 0.0
      %v205 = vadd.f32 %v203, 0.0
      %s206 = scalar_lea.vmem %s166, 1
      %v207 = vld [vmem:[%s206] ss:$4 sm:$0x3]
      %208 = vset.pattern.permute.xlu0 1
      %209 = vperm.xlu0 %208, %v174
      %v210 = vpop.permute.xlu0 %209
      %v213 = vlaneseq
      %v214 = vshrl.u32 %v213, 7
      %v215 = vsub.s32 0, %v214
      %v216 = vrot.slane %v207, %v215
      %v217 = vlaneseq
      %v218 = vshrl.u32 %v217, 7
      %v219 = vsub.s32 1, %v218
      %v220 = vrot.slane %v207, %v219
      %v223 = vsub.f32 %v210, %v216
      %v224 = vsub.f32 %v210, %v220
      %225 = vset.pattern.permute.xlu0 1
      %226 = vperm.xlu0 %225, %v175
      %v227 = vpop.permute.xlu0 %226
      %v229 = vmul.f32 %v223, %v227
      %v230 = vmul.f32 %v224, %v227
      %v231 = vmul.f32 %v229, %v229
      %v232 = vmul.f32 %v230, %v230
      %v233 = vadd.f32 %v204, %v231
      %v234 = vadd.f32 %v205, %v232
      %s235 = scalar_lea.vmem %s166, 2
      %v236 = vld [vmem:[%s235] ss:$4 sm:$0x3]
      %237 = vset.pattern.permute.xlu0 2
      %238 = vperm.xlu0 %237, %v174
      %v239 = vpop.permute.xlu0 %238
      %v242 = vlaneseq
      %v243 = vshrl.u32 %v242, 7
      %v244 = vsub.s32 0, %v243
      %v245 = vrot.slane %v236, %v244
      %v246 = vlaneseq
      %v247 = vshrl.u32 %v246, 7
      %v248 = vsub.s32 1, %v247
      %v249 = vrot.slane %v236, %v248
      %v252 = vsub.f32 %v239, %v245
      %v253 = vsub.f32 %v239, %v249
      %254 = vset.pattern.permute.xlu0 2
      %255 = vperm.xlu0 %254, %v175
      %v256 = vpop.permute.xlu0 %255
      %v258 = vmul.f32 %v252, %v256
      %v259 = vmul.f32 %v253, %v256
      %v260 = vmul.f32 %v258, %v258
      %v261 = vmul.f32 %v259, %v259
      %v262 = vadd.f32 %v233, %v260
      %v263 = vadd.f32 %v234, %v261
      %v264 = vsub.f32 0.0, %v262
      %v265 = vsub.f32 0.0, %v263
      %v268 = vcombine.low %v264, %v265
      %270 = vst [vmem:[%s172] sm:$0xff] %v268
      %s271 = smul.u32 2, %s14
      %p272 = scmp.lt.s32.totalorder %s271, 3
      %s273 = scalar_select %p272, %s271, 3
      %s274 = smul.addr %s273, 4
      %s275 = scalar_lea.vmem %s3, %s274
      // Predicated region
      $region33: #{_forward.4} parent=31 // pred_check
        %p276 = pneg %p100
      $region34: #{_forward.4} parent=31 // pred_check_branch
        %278 = sbr.rel (%p276) target = $region36
      $region35: #{_forward.4} parent=31 // pred_region
        %s279 = smul.u32 2, %s14
      $region36: #{_forward.4} parent=31 // pred_fallthru
        _
    $region32: #{_forward.4} parent=5 // pred_fallthru
      _
    %p280 = scmp.le.s32.totalorder 2, %s9
    // Predicated region
    $region37: #{_forward.4} parent=5 // pred_check
      %p281 = pneg %p280
    $region38: #{_forward.4} parent=5 // pred_check_branch
      %283 = sbr.rel (%p281) target = $region40
    $region39: #{_forward.4} parent=5 // pred_region
      %s284 = ssub.s32 %s9, 2
      // Predicated region
      $region41: #{_forward.4} parent=39 // pred_check
        %p285 = pneg %p106
      $region42: #{_forward.4} parent=39 // pred_check_branch
        %287 = sbr.rel (%p285) target = $region44
      $region43: #{_forward.4} parent=39 // pred_region
        %s288 = smul.u32 2, %s15
        %p289 = scmp.lt.s32.totalorder %s288, 3
        %s290 = scalar_select %p289, %s288, 3
        %s291 = smul.addr %s290, 4
        %s292 = scalar_lea.vmem %s3, %s291
      $region44: #{_forward.4} parent=39 // pred_fallthru
        _
    $region40: #{_forward.4} parent=5 // pred_fallthru
      _
  $region6: #{_forward.4} parent=0 // loop_footer
    %s13 = sadd.s32 1, %s9
  $region7: #{_forward.4} parent=0 // loop_footer_branch
    %8 = sbr.rel target = $region3
  $region8: #{_forward.4} parent=0 // loop_exit
    _

// kernel: _forward.5
$region0: #{_forward.5}
  #allocation0 [shape = 'u32[]', space=smem, size = 0x4, offset = 0x4, fixed_abs, tag = 'smem constant byte address 0x4 - core index']
  #allocation1 [shape = 'u32[144,128]{1,0:T(1,128)}', space=vmem, size = 0x12000, scoped, tag = 'internal scratch']
  %s0 = inlined_call_operand.vmem [shape: f32[2,512], index: 0, kind: input, shape index: {}]
  %s1 = inlined_call_operand.vmem [shape: f32[2,512], index: 1, kind: input, shape index: {}]
  %s2 = inlined_call_operand.vmem [shape: f32[2,512], index: 2, kind: output, shape index: {}]
  %s3 = sld [smem:[#allocation0]]
  $region41: #{_forward.5} parent=0
    _
  %s5 = ssub.s32 1, %s3
  %s6 = scalar_select 0, %s5, %s3
  loop: start=0, step=1, limit=4
  $region2: #{_forward.5} parent=0 // loop_pre_header
    _
  $region3: #{_forward.5} parent=0 // loop_header
    %s8 = sphi 0, %s12
    %p9 = scmp.ge.s32.totalorder %s8, 4
    %s18 = sphi 0, %s20
    %s21 = sphi 0, %s18
    %s22 = sphi 0, %s21
    %s38 = sphi 0, %s22
    %s44 = sphi 0, %s46
    %s47 = sphi 0, %s44
    %s48 = sphi 0, %s47
    %s64 = sphi 0, %s48
    %s70 = sphi 0, %s72
    %s73 = sphi 0, %s70
    %s74 = sphi 0, %s73
    %s90 = sphi 0, %s74
  $region4: #{_forward.5} parent=0 // loop_header_branch
    %11 = sbr.rel (%p9) target = $region8
  $region5: #{_forward.5} parent=0 // loop_body
    %s13 = ssub.s32 %s8, 1
    %s14 = ssub.s32 %s8, 2
    %s15 = sadd.s32 %s8, 1
    %s16 = ssub.s32 %s8, %s15
    %p17 = scmp.eq.s32.totalorder %s16, 0
    %s19 = sadd.s32 %s18, 1
    %s20 = scalar_select %p17, %s18, %s19
    %p23 = pneg %p17
    %p24 = scmp.eq.s32.totalorder %s8, 1
    %p25 = por %p23, %p24
    %p26 = scmp.ne.s32.totalorder %s18, %s21
    %p27 = scmp.eq.s32.totalorder %s8, 0
    %p28 = por %p26, %p27
    %p29 = scmp.ne.s32.totalorder %s18, %s21
    %p30 = scmp.eq.s32.totalorder %s13, 1
    %p31 = por %p29, %p30
    %p32 = scmp.ne.s32.totalorder %s21, %s22
    %p33 = scmp.eq.s32.totalorder %s13, 0
    %p34 = por %p32, %p33
    %p35 = scmp.ne.s32.totalorder %s21, %s22
    %p36 = scmp.eq.s32.totalorder %s14, 1
    %p37 = por %p35, %p36
    %p39 = scmp.ne.s32.totalorder %s22, %s38
    %p40 = scmp.eq.s32.totalorder %s14, 0
    %p41 = por %p39, %p40
    %s42 = ssub.s32 %s8, %s15
    %p43 = scmp.eq.s32.totalorder %s42, 0
    %s45 = sadd.s32 %s44, 1
    %s46 = scalar_select %p43, %s44, %s45
    %p49 = pneg %p43
    %p50 = scmp.eq.s32.totalorder %s8, 1
    %p51 = por %p49, %p50
    %p52 = scmp.ne.s32.totalorder %s44, %s47
    %p53 = scmp.eq.s32.totalorder %s8, 0
    %p54 = por %p52, %p53
    %p55 = scmp.ne.s32.totalorder %s44, %s47
    %p56 = scmp.eq.s32.totalorder %s13, 1
    %p57 = por %p55, %p56
    %p58 = scmp.ne.s32.totalorder %s47, %s48
    %p59 = scmp.eq.s32.totalorder %s13, 0
    %p60 = por %p58, %p59
    %p61 = scmp.ne.s32.totalorder %s47, %s48
    %p62 = scmp.eq.s32.totalorder %s14, 1
    %p63 = por %p61, %p62
    %p65 = scmp.ne.s32.totalorder %s48, %s64
    %p66 = scmp.eq.s32.totalorder %s14, 0
    %p67 = por %p65, %p66
    %s68 = ssub.s32 %s8, %s15
    %p69 = scmp.eq.s32.totalorder %s68, 0
    %s71 = sadd.s32 %s70, 1
    %s72 = scalar_select %p69, %s70, %s71
    %p75 = pneg %p69
    %p76 = scmp.eq.s32.totalorder %s8, 1
    %p77 = por %p75, %p76
    %p78 = scmp.ne.s32.totalorder %s70, %s73
    %p79 = scmp.eq.s32.totalorder %s8, 0
    %p80 = por %p78, %p79
    %p81 = scmp.ne.s32.totalorder %s70, %s73
    %p82 = scmp.eq.s32.totalorder %s13, 1
    %p83 = por %p81, %p82
    %p84 = scmp.ne.s32.totalorder %s73, %s74
    %p85 = scmp.eq.s32.totalorder %s13, 0
    %p86 = por %p84, %p85
    %p87 = scmp.ne.s32.totalorder %s73, %s74
    %p88 = scmp.eq.s32.totalorder %s14, 1
    %p89 = por %p87, %p88
    %p91 = scmp.ne.s32.totalorder %s74, %s90
    %p92 = scmp.eq.s32.totalorder %s14, 0
    %p93 = por %p91, %p92
    %p94 = scmp.le.s32.totalorder 1, %s8
    %p95 = scmp.lt.s32.totalorder %s8, 3
    %p96 = pnand %p94, %p95
    %p97 = pneg %p96
    // Predicated region
    $region9: #{_forward.5} parent=5 // pred_check
      _
    $region10: #{_forward.5} parent=5 // pred_check_branch
      %99 = sbr.rel (%p96) target = $region12
    $region11: #{_forward.5} parent=5 // pred_region
      %s100 = ssub.s32 %s8, 1
    $region12: #{_forward.5} parent=5 // pred_fallthru
      _
    %p101 = scmp.lt.s32.totalorder %s8, 2
    // Predicated region
    $region13: #{_forward.5} parent=5 // pred_check
      %p102 = pneg %p101
    $region14: #{_forward.5} parent=5 // pred_check_branch
      %104 = sbr.rel (%p102) target = $region16
    $region15: #{_forward.5} parent=5 // pred_region
      // Predicated region
      $region17: #{_forward.5} parent=15 // pred_check
        %p105 = pneg %p28
      $region18: #{_forward.5} parent=15 // pred_check_branch
        %107 = sbr.rel (%p105) target = $region20
      $region19: #{_forward.5} parent=15 // pred_region
        %s108 = smul.u32 2, %s8
        %p109 = scmp.lt.s32.totalorder %s108, 3
        %s110 = scalar_select %p109, %s108, 3
        %s111 = smul.addr %s110, 2
        %s112 = scalar_lea.vmem %s0, %s111
        %s113 = smul.u32 2, %s8
      $region20: #{_forward.5} parent=15 // pred_fallthru
        _
      // Predicated region
      $region21: #{_forward.5} parent=15 // pred_check
        %p114 = pneg %p54
      $region22: #{_forward.5} parent=15 // pred_check_branch
        %116 = sbr.rel (%p114) target = $region24
      $region23: #{_forward.5} parent=15 // pred_region
        %s117 = smul.u32 2, %s8
        %p118 = scmp.lt.s32.totalorder %s117, 3
        %s119 = scalar_select %p118, %s117, 3
        %s120 = smul.addr %s119, 2
        %s121 = scalar_lea.vmem %s1, %s120
        %s122 = smul.u32 2, %s8
      $region24: #{_forward.5} parent=15 // pred_fallthru
        _
    $region16: #{_forward.5} parent=5 // pred_fallthru
      _
    %p123 = scmp.le.s32.totalorder 1, %s8
    %p124 = scmp.lt.s32.totalorder %s8, 3
    %p125 = pnand %p123, %p124
    %p126 = pneg %p125
    // Predicated region
    $region25: #{_forward.5} parent=5 // pred_check
      _
    $region26: #{_forward.5} parent=5 // pred_check_branch
      %128 = sbr.rel (%p125) target = $region28
    $region27: #{_forward.5} parent=5 // pred_region
      %s129 = ssub.s32 %s8, 1
      %s130 = smul.u32 2, %s13
      %p131 = scmp.lt.s32.totalorder %s130, 3
      %s132 = scalar_select %p131, %s130, 3
      %s133 = smul.addr %s132, 2
      %s134 = scalar_lea.vmem %s0, %s133
      %p135 = pneg %p34
      %p136 = pneg %p31
      %s137 = smul.u32 2, %s13
      %p138 = scmp.lt.s32.totalorder %s137, 3
      %s139 = scalar_select %p138, %s137, 3
      %s140 = smul.addr %s139, 2
      %s141 = scalar_lea.vmem %s1, %s140
      %p142 = pneg %p60
      %p143 = pneg %p57
      %p144 = pneg %p86
      %p145 = pneg %p83
      %s146 = smul.u32 2, %s13
      %p147 = scmp.lt.s32.totalorder %s146, 3
      %s148 = scalar_select %p147, %s146, 3
      %s149 = smul.addr %s148, 2
      %s150 = scalar_lea.vmem %s2, %s149
      %s151 = smul.u32 2, %s13
      %p152 = scmp.lt.s32.totalorder %s151, 3
      %s153 = scalar_select %p152, %s151, 3
      %s154 = smul.addr %s153, 2
      %s155 = scalar_lea.vmem %s0, %s154
      %s156 = smul.u32 2, %s13
      %s157 = smul.u32 2, %s13
      %p158 = scmp.lt.s32.totalorder %s157, 3
      %s159 = scalar_select %p158, %s157, 3
      %s160 = smul.addr %s159, 2
      %s161 = scalar_lea.vmem %s1, %s160
      %s162 = smul.u32 2, %s13
      %s163 = smul.u32 2, %s13
      %p164 = scmp.lt.s32.totalorder %s163, 3
      %s165 = scalar_select %p164, %s163, 3
      %s166 = smul.addr %s165, 2
      %s167 = scalar_lea.vmem %s2, %s166
      %s168 = smul.u32 2, %s13
      %v169 = vld [vmem:[%s155] sm:$0xf]
      %v170 = vld [vmem:[%s161] sm:$0xf]
      %vm171 = vcmp.eq.f32.partialorder %v170, 1.0
      %vm172 = vcmp.eq.f32.partialorder %v170, 3.0
      %vm173 = vmor %vm171, %vm172
      %vm174 = vcmp.ge.f32.partialorder %v170, 2.0
      %v175 = vsel %vm173, 1.0, 0.0
      %v176 = vand.u32 2147483647, %v169
      %v177 = vsub.f32 0.0, %v176
      %v178 = vmul.f32 %v177, 1.442695
      %v179 = vpow.pop %v178
      %v180 = vadd.f32 %v179, 1.0
      %v181 = vrcp.pop %v180
      %v182 = vmul.f32 1.0, %v181
      %vm183 = vcmp.ge.f32.partialorder %v169, 0.0
      %v184 = vmul.f32 %v179, %v182
      %v185 = vsel %vm183, %v182, %v184
      %v186 = vmax.f32 %v185, 0.0001
      %v187 = vmin.f32 %v186, 0.9999
      %v188 = vsel %vm173, 0.75, 0.25
      %v189 = vsub.f32 1.0, %v187
      %v190 = vsel %vm173, %v189, %v187
      %v191 = vmul.f32 %v190, %v190
      %v192 = vmul.f32 %v188, %v191
      %v193 = vmax.f32 %v169, 0.0
      %v194 = vmul.f32 %v169, %v175
      %v195 = vsub.f32 %v193, %v194
      %v196 = vlog2.pop %v180
      %v197 = vmul.f32 %v196, 0.6931472
      %v198 = vadd.f32 %v195, %v197
      %v199 = vmul.f32 %v192, %v198
      %v200 = vsel %vm174, 0.0, %v199
      %vm201 = vcmp.lt.f32.partialorder %v187, 0.8
      %vm202 = vmand %vm201, %vm173
      %v203 = vmul.f32 %v200, 4.0
      %v204 = vsel %vm202, %v203, %v200
      %v205 = vsub.f32 %v187, 0.5
      %v206 = vrcp.pop 0.2
      %v207 = vmul.f32 %v205, %v206
      %v208 = vmax.f32 %v207, 0.0
      %v209 = vmin.f32 %v208, 1.0
      %v210 = vmul.f32 %v209, 0.5
      %v211 = vadd.f32 %v210, 1.5
      %vm212 = vcmp.gt.f32.partialorder %v187, 0.5
      %vm213 = vmxor %vm173, 1
      %vm214 = vmand %vm212, %vm213
      %v215 = vmul.f32 %v204, %v211
      %v216 = vsel %vm214, %v215, %v204
      %217 = vst [vmem:[%s167] sm:$0xf] %v216
      %s218 = smul.u32 2, %s13
      %p219 = scmp.lt.s32.totalorder %s218, 3
      %s220 = scalar_select %p219, %s218, 3
      %s221 = smul.addr %s220, 2
      %s222 = scalar_lea.vmem %s2, %s221
      // Predicated region
      $region29: #{_forward.5} parent=27 // pred_check
        %p223 = pneg %p83
      $region30: #{_forward.5} parent=27 // pred_check_branch
        %225 = sbr.rel (%p223) target = $region32
      $region31: #{_forward.5} parent=27 // pred_region
        %s226 = smul.u32 2, %s13
      $region32: #{_forward.5} parent=27 // pred_fallthru
        _
    $region28: #{_forward.5} parent=5 // pred_fallthru
      _
    %p227 = scmp.le.s32.totalorder 2, %s8
    // Predicated region
    $region33: #{_forward.5} parent=5 // pred_check
      %p228 = pneg %p227
    $region34: #{_forward.5} parent=5 // pred_check_branch
      %230 = sbr.rel (%p228) target = $region36
    $region35: #{_forward.5} parent=5 // pred_region
      %s231 = ssub.s32 %s8, 2
      // Predicated region
      $region37: #{_forward.5} parent=35 // pred_check
        %p232 = pneg %p89
      $region38: #{_forward.5} parent=35 // pred_check_branch
        %234 = sbr.rel (%p232) target = $region40
      $region39: #{_forward.5} parent=35 // pred_region
        %s235 = smul.u32 2, %s14
        %p236 = scmp.lt.s32.totalorder %s235, 3
        %s237 = scalar_select %p236, %s235, 3
        %s238 = smul.addr %s237, 2
        %s239 = scalar_lea.vmem %s2, %s238
      $region40: #{_forward.5} parent=35 // pred_fallthru
        _
    $region36: #{_forward.5} parent=5 // pred_fallthru
      _
  $region6: #{_forward.5} parent=0 // loop_footer
    %s12 = sadd.s32 1, %s8
  $region7: #{_forward.5} parent=0 // loop_footer_branch
    %7 = sbr.rel target = $region3
  $region8: #{_forward.5} parent=0 // loop_exit
    _

// kernel: _forward.7
$region0: #{_forward.7}
  #allocation0 [shape = 'u32[]', space=smem, size = 0x4, offset = 0x4, fixed_abs, tag = 'smem constant byte address 0x4 - core index']
  #allocation1 [shape = 'u32[144,128]{1,0:T(1,128)}', space=vmem, size = 0x12000, scoped, tag = 'internal scratch']
  %s0 = inlined_call_operand.vmem [shape: f32[6,1,128], index: 0, kind: input, shape index: {}]
  %s1 = inlined_call_operand.vmem [shape: f32[6,1,128], index: 1, kind: input, shape index: {}]
  %s2 = inlined_call_operand.vmem [shape: f32[1,128], index: 2, kind: output, shape index: {}]
  %s3 = sld [smem:[#allocation0]]
  $region18: #{_forward.7} parent=0
    _
  %s5 = ssub.s32 1, %s3
  %s6 = scalar_select 0, %s5, %s3
  // Predicated region
  $region2: #{_forward.7} parent=0 // pred_check
    _
  $region3: #{_forward.7} parent=0 // pred_check_branch
    %8 = sbr.rel (0) target = $region5
  $region4: #{_forward.7} parent=0 // pred_region
    _
  $region5: #{_forward.7} parent=0 // pred_fallthru
    _
  // Predicated region
  $region6: #{_forward.7} parent=0 // pred_check
    _
  $region7: #{_forward.7} parent=0 // pred_check_branch
    %10 = sbr.rel (0) target = $region9
  $region8: #{_forward.7} parent=0 // pred_region
    _
  $region9: #{_forward.7} parent=0 // pred_fallthru
    _
  %v11 = vld [vmem:[%s0] sm:$0x1]
  %s12 = scalar_lea.vmem %s0, 1
  %v13 = vld [vmem:[%s12] sm:$0x1]
  %s14 = scalar_lea.vmem %s0, 2
  %v15 = vld [vmem:[%s14] sm:$0x1]
  %s16 = scalar_lea.vmem %s0, 3
  %v17 = vld [vmem:[%s16] sm:$0x1]
  %s18 = scalar_lea.vmem %s0, 4
  %v19 = vld [vmem:[%s18] sm:$0x1]
  %s20 = scalar_lea.vmem %s0, 5
  %v21 = vld [vmem:[%s20] sm:$0x1]
  %v22 = vld [vmem:[%s1] sm:$0x1]
  %s23 = scalar_lea.vmem %s1, 1
  %v24 = vld [vmem:[%s23] sm:$0x1]
  %s25 = scalar_lea.vmem %s1, 2
  %v26 = vld [vmem:[%s25] sm:$0x1]
  %s27 = scalar_lea.vmem %s1, 3
  %v28 = vld [vmem:[%s27] sm:$0x1]
  %s29 = scalar_lea.vmem %s1, 4
  %v30 = vld [vmem:[%s29] sm:$0x1]
  %s31 = scalar_lea.vmem %s1, 5
  %v32 = vld [vmem:[%s31] sm:$0x1]
  %v33 = vmul.f32 %v17, 0.5
  %v34 = vsub.f32 %v11, %v33
  %v35 = vadd.f32 %v11, %v33
  %v36 = vmul.f32 %v19, 0.5
  %v37 = vsub.f32 %v13, %v36
  %v38 = vadd.f32 %v13, %v36
  %v39 = vmul.f32 %v21, 0.5
  %v40 = vsub.f32 %v15, %v39
  %v41 = vadd.f32 %v15, %v39
  %v42 = vmul.f32 %v28, 0.5
  %v43 = vsub.f32 %v22, %v42
  %v44 = vadd.f32 %v22, %v42
  %v45 = vmul.f32 %v30, 0.5
  %v46 = vsub.f32 %v24, %v45
  %v47 = vadd.f32 %v24, %v45
  %v48 = vmul.f32 %v32, 0.5
  %v49 = vsub.f32 %v26, %v48
  %v50 = vadd.f32 %v26, %v48
  %v51 = vsub.f32 %v41, %v40
  %v52 = vsub.f32 %v38, %v37
  %v53 = vsub.f32 %v35, %v34
  %v54 = vsub.f32 %v50, %v49
  %v55 = vsub.f32 %v47, %v46
  %v56 = vsub.f32 %v44, %v43
  %v57 = vmin.f32 %v41, %v50
  %v58 = vmax.f32 %v40, %v49
  %v59 = vsub.f32 %v57, %v58
  %v60 = vmax.f32 %v59, 0.0
  %v61 = vmin.f32 %v38, %v47
  %v62 = vmax.f32 %v37, %v46
  %v63 = vsub.f32 %v61, %v62
  %v64 = vmax.f32 %v63, 0.0
  %v65 = vmul.f32 %v60, %v64
  %v66 = vmin.f32 %v35, %v44
  %v67 = vmax.f32 %v34, %v43
  %v68 = vsub.f32 %v66, %v67
  %v69 = vmax.f32 %v68, 0.0
  %v70 = vmul.f32 %v65, %v69
  %v71 = vadd.f32 %v70, 1e-07
  %v72 = vmul.f32 %v51, %v52
  %v73 = vmul.f32 %v72, %v53
  %v74 = vmul.f32 %v54, %v55
  %v75 = vmul.f32 %v74, %v56
  %v76 = vadd.f32 %v73, %v75
  %v77 = vsub.f32 %v76, %v71
  %v78 = vrcp.pop %v77
  %v79 = vmul.f32 %v71, %v78
  %v80 = vmax.f32 %v41, %v50
  %v81 = vmin.f32 %v40, %v49
  %v82 = vsub.f32 %v80, %v81
  %v83 = vmax.f32 %v38, %v47
  %v84 = vmin.f32 %v37, %v46
  %v85 = vsub.f32 %v83, %v84
  %v86 = vmax.f32 %v35, %v44
  %v87 = vmin.f32 %v34, %v43
  %v88 = vsub.f32 %v86, %v87
  %v89 = vmul.f32 %v82, %v82
  %v90 = vmul.f32 %v85, %v85
  %v91 = vadd.f32 %v89, %v90
  %v92 = vmul.f32 %v88, %v88
  %v93 = vadd.f32 %v91, %v92
  %v94 = vadd.f32 %v93, 1e-07
  %v95 = vadd.f32 %v49, %v50
  %v96 = vsub.f32 %v95, %v40
  %v97 = vsub.f32 %v96, %v41
  %v98 = vmul.f32 %v97, %v97
  %v99 = vadd.f32 %v46, %v47
  %v100 = vsub.f32 %v99, %v37
  %v101 = vsub.f32 %v100, %v38
  %v102 = vmul.f32 %v101, %v101
  %v103 = vadd.f32 %v98, %v102
  %v104 = vadd.f32 %v43, %v44
  %v105 = vsub.f32 %v104, %v34
  %v106 = vsub.f32 %v105, %v35
  %v107 = vmul.f32 %v106, %v106
  %v108 = vadd.f32 %v103, %v107
  %v109 = vrcp.pop 4.0
  %v110 = vmul.f32 %v108, %v109
  %v111 = vrcp.pop %v94
  %v112 = vmul.f32 %v110, %v111
  %v113 = vsub.f32 %v79, %v112
  %114 = vst [vmem:[%s2] sm:$0x1] %v113
  // Predicated region
  $region10: #{_forward.7} parent=0 // pred_check
    _
  $region11: #{_forward.7} parent=0 // pred_check_branch
    %116 = sbr.rel (0) target = $region13
  $region12: #{_forward.7} parent=0 // pred_region
    _
  $region13: #{_forward.7} parent=0 // pred_fallthru
    _
  // Predicated region
  $region14: #{_forward.7} parent=0 // pred_check
    _
  $region15: #{_forward.7} parent=0 // pred_check_branch
    %118 = sbr.rel (0) target = $region17
  $region16: #{_forward.7} parent=0 // pred_region
    _
  $region17: #{_forward.7} parent=0 // pred_fallthru
    _

// kernel: _forward.6
$region0: #{_forward.6}
  #allocation0 [shape = 'u32[]', space=smem, size = 0x4, offset = 0x4, fixed_abs, tag = 'smem constant byte address 0x4 - core index']
  #allocation1 [shape = 'u32[144,128]{1,0:T(1,128)}', space=vmem, size = 0x12000, scoped, tag = 'internal scratch']
  %s0 = inlined_call_operand.vmem [shape: f32[36,256], index: 0, kind: input, shape index: {}]
  %s1 = inlined_call_operand.vmem [shape: f32[1,256], index: 1, kind: input, shape index: {}]
  %s2 = inlined_call_operand.vmem [shape: f32[1,256], index: 2, kind: output, shape index: {}]
  %s3 = sld [smem:[#allocation0]]
  $region79: #{_forward.6} parent=0
    _
  %s5 = ssub.s32 1, %s3
  %s6 = scalar_select 0, %s5, %s3
  $region1: #{_forward.6} parent=0
    #allocation2 [shape = 'u8[40960]{0}', space=vmem, size = 0xa000, scoped, tag = 'input window, operand 0']
    loop: start=0, step=1, limit=4
    $region2: #{_forward.6} parent=1 // loop_pre_header
      _
    $region3: #{_forward.6} parent=1 // loop_header
      %s8 = sphi 0, %s12
      %p9 = scmp.ge.s32.totalorder %s8, 4
      %s18 = sphi 0, %s20
      %s21 = sphi 0, %s18
      %s22 = sphi 0, %s21
      %s38 = sphi 0, %s22
      %s44 = sphi 0, %s46
      %s47 = sphi 0, %s44
      %s48 = sphi 0, %s47
      %s64 = sphi 0, %s48
      %s70 = sphi 0, %s72
      %s73 = sphi 0, %s70
      %s74 = sphi 0, %s73
      %s90 = sphi 0, %s74
    $region4: #{_forward.6} parent=1 // loop_header_branch
      %11 = sbr.rel (%p9) target = $region8
    $region5: #{_forward.6} parent=1 // loop_body
      %s13 = ssub.s32 %s8, 1
      %s14 = ssub.s32 %s8, 2
      %s15 = sadd.s32 %s8, 1
      %s16 = ssub.s32 %s8, %s15
      %p17 = scmp.eq.s32.totalorder %s16, 0
      %s19 = sadd.s32 %s18, 1
      %s20 = scalar_select %p17, %s18, %s19
      %p23 = pneg %p17
      %p24 = scmp.eq.s32.totalorder %s8, 1
      %p25 = por %p23, %p24
      %p26 = scmp.ne.s32.totalorder %s18, %s21
      %p27 = scmp.eq.s32.totalorder %s8, 0
      %p28 = por %p26, %p27
      %p29 = scmp.ne.s32.totalorder %s18, %s21
      %p30 = scmp.eq.s32.totalorder %s13, 1
      %p31 = por %p29, %p30
      %p32 = scmp.ne.s32.totalorder %s21, %s22
      %p33 = scmp.eq.s32.totalorder %s13, 0
      %p34 = por %p32, %p33
      %p35 = scmp.ne.s32.totalorder %s21, %s22
      %p36 = scmp.eq.s32.totalorder %s14, 1
      %p37 = por %p35, %p36
      %p39 = scmp.ne.s32.totalorder %s22, %s38
      %p40 = scmp.eq.s32.totalorder %s14, 0
      %p41 = por %p39, %p40
      %s42 = ssub.s32 %s8, %s15
      %p43 = scmp.eq.s32.totalorder %s42, 0
      %s45 = sadd.s32 %s44, 1
      %s46 = scalar_select %p43, %s44, %s45
      %p49 = pneg %p43
      %p50 = scmp.eq.s32.totalorder %s8, 1
      %p51 = por %p49, %p50
      %p52 = scmp.ne.s32.totalorder %s44, %s47
      %p53 = scmp.eq.s32.totalorder %s8, 0
      %p54 = por %p52, %p53
      %p55 = scmp.ne.s32.totalorder %s44, %s47
      %p56 = scmp.eq.s32.totalorder %s13, 1
      %p57 = por %p55, %p56
      %p58 = scmp.ne.s32.totalorder %s47, %s48
      %p59 = scmp.eq.s32.totalorder %s13, 0
      %p60 = por %p58, %p59
      %p61 = scmp.ne.s32.totalorder %s47, %s48
      %p62 = scmp.eq.s32.totalorder %s14, 1
      %p63 = por %p61, %p62
      %p65 = scmp.ne.s32.totalorder %s48, %s64
      %p66 = scmp.eq.s32.totalorder %s14, 0
      %p67 = por %p65, %p66
      %s68 = ssub.s32 %s8, %s15
      %p69 = scmp.eq.s32.totalorder %s68, 0
      %s71 = sadd.s32 %s70, 1
      %s72 = scalar_select %p69, %s70, %s71
      %p75 = pneg %p69
      %p76 = scmp.eq.s32.totalorder %s8, 1
      %p77 = por %p75, %p76
      %p78 = scmp.ne.s32.totalorder %s70, %s73
      %p79 = scmp.eq.s32.totalorder %s8, 0
      %p80 = por %p78, %p79
      %p81 = scmp.ne.s32.totalorder %s70, %s73
      %p82 = scmp.eq.s32.totalorder %s13, 1
      %p83 = por %p81, %p82
      %p84 = scmp.ne.s32.totalorder %s73, %s74
      %p85 = scmp.eq.s32.totalorder %s13, 0
      %p86 = por %p84, %p85
      %p87 = scmp.ne.s32.totalorder %s73, %s74
      %p88 = scmp.eq.s32.totalorder %s14, 1
      %p89 = por %p87, %p88
      %p91 = scmp.ne.s32.totalorder %s74, %s90
      %p92 = scmp.eq.s32.totalorder %s14, 0
      %p93 = por %p91, %p92
      %p94 = scmp.le.s32.totalorder 1, %s8
      %p95 = scmp.lt.s32.totalorder %s8, 3
      %p96 = pnand %p94, %p95
      %p97 = pneg %p96
      // Predicated region
      $region9: #{_forward.6} parent=5 // pred_check
        _
      $region10: #{_forward.6} parent=5 // pred_check_branch
        %99 = sbr.rel (%p96) target = $region12
      $region11: #{_forward.6} parent=5 // pred_region
        %s100 = ssub.s32 %s8, 1
      $region12: #{_forward.6} parent=5 // pred_fallthru
        _
      %p101 = scmp.lt.s32.totalorder %s8, 2
      // Predicated region
      $region13: #{_forward.6} parent=5 // pred_check
        %p102 = pneg %p101
      $region14: #{_forward.6} parent=5 // pred_check_branch
        %104 = sbr.rel (%p102) target = $region16
      $region15: #{_forward.6} parent=5 // pred_region
        // Predicated region
        $region17: #{_forward.6} parent=15 // pred_check
          %p105 = pneg %p28
        $region18: #{_forward.6} parent=15 // pred_check_branch
          %107 = sbr.rel (%p105) target = $region20
        $region19: #{_forward.6} parent=15 // pred_region
          %s108 = sand.u32 %s18, 1
          %s109 = sand.u32 %s18, 1
          %s110 = smul.addr %s109, 40
          %s111 = scalar_lea.vmem [#allocation2], %s110
          %s112 = smul.addr %s8, 8
          %s113 = scalar_lea.vmem %s0, %s112
          // Predicated region
          $region21: #{_forward.6} parent=19 // pred_check
            _
          $region22: #{_forward.6} parent=19 // pred_check_branch
            %115 = sbr.rel (0) target = $region24
          $region23: #{_forward.6} parent=19 // pred_region
            // Predicated region
            $region25: #{_forward.6} parent=23 // pred_check
              _
            $region26: #{_forward.6} parent=23 // pred_check_branch
              %117 = sbr.rel (0) target = $region28
            $region27: #{_forward.6} parent=23 // pred_region
              // Predicated region
              $region40: #{_forward.6} parent=27 // pred_check
                _
              $region41: #{_forward.6} parent=27 // pred_check_branch
                %141 = sbr.rel (0) target = $region43
              $region42: #{_forward.6} parent=27 // pred_region
                loop: start=0, step=1, limit=1
                $region44: #{_forward.6} parent=42 // loop_pre_header
                  _
                $region45: #{_forward.6} parent=42 // loop_header
                  %s143 = sphi 0, %s147
                  %p144 = scmp.ge.s32.totalorder %s143, 1
                  %s148 = sphi %s113, %s113
                  %s149 = sphi %s111, %s111
                $region46: #{_forward.6} parent=42 // loop_header_branch
                  %146 = sbr.rel (%p144) target = $region50
                $region47: #{_forward.6} parent=42 // loop_body
                  %v150 = vld [vmem:[%s148] sm:$0xff]
                  %151 = vst [vmem:[%s149] sm:$0xff] %v150
                  %v152 = vld [vmem:[%s148 + $0x10] sm:$0xff]
                  %153 = vst [vmem:[%s149 + $0x8] sm:$0xff] %v152
                  %v154 = vld [vmem:[%s148 + $0x20] sm:$0xff]
                  %155 = vst [vmem:[%s149 + $0x10] sm:$0xff] %v154
                  %v156 = vld [vmem:[%s148 + $0x30] sm:$0xff]
                  %157 = vst [vmem:[%s149 + $0x18] sm:$0xff] %v156
                  %v158 = vld [vmem:[%s148 + $0x40] sm:$0xff]
                  %159 = vst [vmem:[%s149 + $0x20] sm:$0xff] %v158
                $region48: #{_forward.6} parent=42 // loop_footer
                  %s147 = sadd.s32 1, %s143
                $region49: #{_forward.6} parent=42 // loop_footer_branch
                  %142 = sbr.rel target = $region45
                $region50: #{_forward.6} parent=42 // loop_exit
                  _
              $region43: #{_forward.6} parent=27 // pred_fallthru
                _
              // Predicated region
              $region51: #{_forward.6} parent=27 // pred_check
                _
              $region52: #{_forward.6} parent=27 // pred_check_branch
                %161 = sbr.rel target = $region54
              $region53: #{_forward.6} parent=27 // pred_region
                _
              $region54: #{_forward.6} parent=27 // pred_fallthru
                _
            $region28: #{_forward.6} parent=23 // pred_fallthru
              _
            // Predicated region
            $region29: #{_forward.6} parent=23 // pred_check
              _
            $region30: #{_forward.6} parent=23 // pred_check_branch
              %119 = sbr.rel target = $region32
            $region31: #{_forward.6} parent=23 // pred_region
              %s121 = ssub.s32 256, 1
              loop: start=0, step=1, limit=1
              $region33: #{_forward.6} parent=31 // loop_pre_header
                _
              $region34: #{_forward.6} parent=31 // loop_header
                %s123 = sphi 0, %s127
                %p124 = scmp.ge.s32.totalorder %s123, 1
                %s128 = sphi %s113, %s113
                %s129 = sphi %s111, %s111
              $region35: #{_forward.6} parent=31 // loop_header_branch
                %126 = sbr.rel (%p124) target = $region39
              $region36: #{_forward.6} parent=31 // loop_body
                %v130 = vld [vmem:[%s128] sm:%s121]
                %131 = vst [vmem:[%s129] sm:%s121] %v130
                %v132 = vld [vmem:[%s128 + $0x10] sm:%s121]
                %133 = vst [vmem:[%s129 + $0x8] sm:%s121] %v132
                %v134 = vld [vmem:[%s128 + $0x20] sm:%s121]
                %135 = vst [vmem:[%s129 + $0x10] sm:%s121] %v134
                %v136 = vld [vmem:[%s128 + $0x30] sm:%s121]
                %137 = vst [vmem:[%s129 + $0x18] sm:%s121] %v136
                %v138 = vld [vmem:[%s128 + $0x40] sm:%s121]
                %139 = vst [vmem:[%s129 + $0x20] sm:%s121] %v138
              $region37: #{_forward.6} parent=31 // loop_footer
                %s127 = sadd.s32 1, %s123
              $region38: #{_forward.6} parent=31 // loop_footer_branch
                %122 = sbr.rel target = $region34
              $region39: #{_forward.6} parent=31 // loop_exit
                _
            $region32: #{_forward.6} parent=23 // pred_fallthru
              _
          $region24: #{_forward.6} parent=19 // pred_fallthru
            _
          %162 = vnop
        $region20: #{_forward.6} parent=15 // pred_fallthru
          _
        // Predicated region
        $region55: #{_forward.6} parent=15 // pred_check
          %p163 = pneg %p54
        $region56: #{_forward.6} parent=15 // pred_check_branch
          %165 = sbr.rel (%p163) target = $region58
        $region57: #{_forward.6} parent=15 // pred_region
          %p166 = scmp.lt.s32.totalorder %s8, 1
          %s167 = scalar_select %p166, %s8, 1
          %s168 = scalar_lea.vmem %s1, %s167
        $region58: #{_forward.6} parent=15 // pred_fallthru
          _
      $region16: #{_forward.6} parent=5 // pred_fallthru
        _
      %p169 = scmp.le.s32.totalorder 1, %s8
      %p170 = scmp.lt.s32.totalorder %s8, 3
      %p171 = pnand %p169, %p170
      %p172 = pneg %p171
      // Predicated region
      $region59: #{_forward.6} parent=5 // pred_check
        _
      $region60: #{_forward.6} parent=5 // pred_check_branch
        %174 = sbr.rel (%p171) target = $region62
      $region61: #{_forward.6} parent=5 // pred_region
        %s175 = ssub.s32 %s8, 1
        %s176 = sand.u32 %s21, 1
        %s177 = sand.u32 %s21, 1
        %s178 = smul.addr %s177, 40
        %s179 = scalar_lea.vmem [#allocation2], %s178
        // Predicated region
        $region63: #{_forward.6} parent=61 // pred_check
          %p180 = pneg %p34
        $region64: #{_forward.6} parent=61 // pred_check_branch
          %182 = sbr.rel (%p180) target = $region66
        $region65: #{_forward.6} parent=61 // pred_region
          _
        $region66: #{_forward.6} parent=61 // pred_fallthru
          _
        %s183 = sand.u32 %s21, 1
        %s184 = sand.u32 %s21, 1
        %s185 = smul.addr %s184, 40
        %s186 = scalar_lea.vmem [#allocation2], %s185
        %p187 = pneg %p34
        %p188 = pneg %p31
        %p189 = scmp.lt.s32.totalorder %s13, 1
        %s190 = scalar_select %p189, %s13, 1
        %s191 = scalar_lea.vmem %s1, %s190
        %p192 = pneg %p60
        %p193 = pneg %p57
        %p194 = pneg %p86
        %p195 = pneg %p83
        %p196 = scmp.lt.s32.totalorder %s13, 1
        %s197 = scalar_select %p196, %s13, 1
        %s198 = scalar_lea.vmem %s2, %s197
        %p199 = scmp.lt.s32.totalorder %s13, 1
        %s200 = scalar_select %p199, %s13, 1
        %s201 = scalar_lea.vmem %s1, %s200
        %p202 = scmp.lt.s32.totalorder %s13, 1
        %s203 = scalar_select %p202, %s13, 1
        %s204 = scalar_lea.vmem %s2, %s203
        %v205 = vld [vmem:[%s179] sm:$0xff]
        %v206 = vld [vmem:[%s179 + $0x8] sm:$0xff]
        %v207 = vld [vmem:[%s179 + $0x10] sm:$0xff]
        %v208 = vld [vmem:[%s179 + $0x18] sm:$0xff]
        %v209 = vld [vmem:[%s179 + $0x20] sm:$0xf]
        %v210 = vld [vmem:[%s201] sm:$0x1]
        %v211 = vceil.f32 %v210
        %v212 = vmax.f32 %v211, 0.0
        %v213 = vmin.f32 %v212, 36.0
        %v214 = vcvt.f32.s32.to.zero.pseudo %v213
        %v215 = vsub.s32 %v214, 1
        %vm216 = vcmp.lt.s32.totalorder %v215, 0
        %v217 = vadd.s32 %v215, 36
        %v218 = vsel %vm216, %v217, %v215
        %vm219 = vcmp.ge.s32.totalorder %v214, 36
        %v220 = vsub.s32 %v214, 36
        %v221 = vsel %vm219, %v220, %v214
        %v222 = vcvt.s32.f32 %v218
        %v223 = vadd.f32 %v222, 0.0
        %v224 = vcvt.s32.f32 %v221
        %v225 = vadd.f32 %v224, 0.0
        %v226 = vsub.f32 %v225, %v210
        %v227 = vsub.f32 %v210, %v223
        %v228 = vlaneseq
        %v229 = vshrl.u32 %v228, 7
        %v230 = vadd.s32 %v229, 8
        %v231 = vadd.s32 %v229, 16
        %v232 = vadd.s32 %v229, 24
        %v233 = vadd.s32 %v229, 32
        %v234 = vlaneseq
        %v235 = vshrl.u32 %v234, 7
        %v236 = vsub.s32 0, %v235
        %v237 = vrot.slane %v218, %v236
        %vm238 = vcmp.eq.s32.totalorder %v229, %v237
        %vm239 = vcmp.eq.s32.totalorder %v230, %v237
        %vm240 = vcmp.eq.s32.totalorder %v231, %v237
        %vm241 = vcmp.eq.s32.totalorder %v232, %v237
        %vm242 = vcmp.eq.s32.totalorder %v233, %v237
        %v244 = vlaneseq
        %v245 = vshrl.u32 %v244, 7
        %v246 = vsub.s32 0, %v245
        %v247 = vrot.slane %v226, %v246
        %v249 = vsel %vm238, %v247, 0.0
        %v250 = vsel %vm239, %v247, 0.0
        %v251 = vsel %vm240, %v247, 0.0
        %v252 = vsel %vm241, %v247, 0.0
        %v253 = vsel %vm242, %v247, 0.0
        %v254 = vlaneseq
        %v255 = vshrl.u32 %v254, 7
        %v256 = vsub.s32 0, %v255
        %v257 = vrot.slane %v221, %v256
        %vm258 = vcmp.eq.s32.totalorder %v229, %v257
        %vm259 = vcmp.eq.s32.totalorder %v230, %v257
        %vm260 = vcmp.eq.s32.totalorder %v231, %v257
        %vm261 = vcmp.eq.s32.totalorder %v232, %v257
        %vm262 = vcmp.eq.s32.totalorder %v233, %v257
        %v264 = vlaneseq
        %v265 = vshrl.u32 %v264, 7
        %v266 = vsub.s32 0, %v265
        %v267 = vrot.slane %v227, %v266
        %v269 = vsel %vm258, %v267, 0.0
        %v270 = vsel %vm259, %v267, 0.0
        %v271 = vsel %vm260, %v267, 0.0
        %v272 = vsel %vm261, %v267, 0.0
        %v273 = vsel %vm262, %v267, 0.0
        %v274 = vadd.f32 %v249, %v269
        %v275 = vadd.f32 %v250, %v270
        %v276 = vadd.f32 %v251, %v271
        %v277 = vadd.f32 %v252, %v272
        %v278 = vadd.f32 %v253, %v273
        %vm279 = vcmask 1043456
        %v280 = vsel %vm279, %v209, -inf
        %v281 = vmax.f32 %v205, %v280
        %v282 = vmax.f32 %v281, %v206
        %v283 = vmax.f32 %v207, %v208
        %v284 = vmax.f32 %v282, %v283
        %v285 = vrot.slane %v284, 4
        %v286 = vmax.f32 %v284, %v285
        %v287 = vrot.slane %v286, 2
        %v288 = vmax.f32 %v286, %v287
        %v289 = vrot.slane %v288, 1
        %v290 = vmax.f32 %v288, %v289
        %v291 = vsub.f32 %v205, %v290
        %v292 = vsub.f32 %v206, %v290
        %v293 = vsub.f32 %v207, %v290
        %v294 = vsub.f32 %v208, %v290
        %v295 = vsub.f32 %v209, %v290
        %v296 = vmul.f32 %v291, 1.442695
        %v297 = vpow.pop %v296
        %v298 = vmul.f32 %v292, 1.442695
        %v299 = vpow.pop %v298
        %v300 = vmul.f32 %v293, 1.442695
        %v301 = vpow.pop %v300
        %v302 = vmul.f32 %v294, 1.442695
        %v303 = vpow.pop %v302
        %v304 = vmul.f32 %v295, 1.442695
        %v305 = vpow.pop %v304
        %v306 = vadd.f32 %v297, %v299
        %v307 = vadd.f32 %v306, %v301
        %v308 = vadd.f32 %v307, %v303
        %v309 = vsel %vm279, %v305, 0.0
        %v310 = vadd.f32 %v308, %v309
        %v311 = vrot.slane %v310, 4
        %v312 = vadd.f32 %v310, %v311
        %v313 = vrot.slane %v312, 2
        %v314 = vadd.f32 %v312, %v313
        %v315 = vrot.slane %v314, 1
        %v316 = vadd.f32 %v314, %v315
        %v317 = vlog2.pop %v316
        %v318 = vmul.f32 %v317, 0.6931472
        %v319 = vadd.f32 %v290, %v318
        %v320 = vadd.f32 %v226, %v227
        %v321 = vmul.f32 %v319, %v320
        %v322 = vmul.f32 %v205, %v274
        %v323 = vmul.f32 %v206, %v275
        %v324 = vmul.f32 %v207, %v276
        %v325 = vmul.f32 %v208, %v277
        %v326 = vmul.f32 %v209, %v278
        %v327 = vadd.f32 %v322, %v323
        %v328 = vadd.f32 %v327, %v324
        %v329 = vadd.f32 %v328, %v325
        %v330 = vsel %vm279, %v326, 0.0
        %v331 = vadd.f32 %v329, %v330
        %v332 = vrot.slane %v331, 4
        %v333 = vadd.f32 %v331, %v332
        %v334 = vrot.slane %v333, 2
        %v335 = vadd.f32 %v333, %v334
        %v336 = vrot.slane %v335, 1
        %v337 = vadd.f32 %v335, %v336
        %v338 = vsub.f32 %v321, %v337
        %339 = vst [vmem:[%s204] sm:$0x1] %v338
        %p340 = scmp.lt.s32.totalorder %s13, 1
        %s341 = scalar_select %p340, %s13, 1
        %s342 = scalar_lea.vmem %s2, %s341
        // Predicated region
        $region67: #{_forward.6} parent=61 // pred_check
          %p343 = pneg %p83
        $region68: #{_forward.6} parent=61 // pred_check_branch
          %345 = sbr.rel (%p343) target = $region70
        $region69: #{_forward.6} parent=61 // pred_region
          _
        $region70: #{_forward.6} parent=61 // pred_fallthru
          _
      $region62: #{_forward.6} parent=5 // pred_fallthru
        _
      %p346 = scmp.le.s32.totalorder 2, %s8
      // Predicated region
      $region71: #{_forward.6} parent=5 // pred_check
        %p347 = pneg %p346
      $region72: #{_forward.6} parent=5 // pred_check_branch
        %349 = sbr.rel (%p347) target = $region74
      $region73: #{_forward.6} parent=5 // pred_region
        %s350 = ssub.s32 %s8, 2
        // Predicated region
        $region75: #{_forward.6} parent=73 // pred_check
          %p351 = pneg %p89
        $region76: #{_forward.6} parent=73 // pred_check_branch
          %353 = sbr.rel (%p351) target = $region78
        $region77: #{_forward.6} parent=73 // pred_region
          %p354 = scmp.lt.s32.totalorder %s14, 1
          %s355 = scalar_select %p354, %s14, 1
          %s356 = scalar_lea.vmem %s2, %s355
        $region78: #{_forward.6} parent=73 // pred_fallthru
          _
      $region74: #{_forward.6} parent=5 // pred_fallthru
        _
    $region6: #{_forward.6} parent=1 // loop_footer
      %s12 = sadd.s32 1, %s8
    $region7: #{_forward.6} parent=1 // loop_footer_branch
      %7 = sbr.rel target = $region3
    $region8: #{_forward.6} parent=1 // loop_exit
      _

</llo_original>
